<compile_context>
chip_gen: v7x
topology: tpu7x:2x2x1
jax: 0.10.0
libtpu: 0.0.40
codegen_flags: <defaults>
</compile_context>

<pallas_src>
import functools

import jax
import jax.numpy as jnp
from jax.experimental import pallas as pl
from jax.experimental.pallas import tpu as pltpu

EPS = 1e-5
EXPANSION = 4

# Row-tile target for the pointwise (1x1) GEMM epilogue.  512 rows reaches
# ~85% of HBM roofline on v6e; re-derive against v7x's 64 MiB VMEM.
_TM_TARGET = 512
# Scoped VMEM limit: above v5e's 16 MiB default, safely below every chip's
# physical capacity.  Re-derive for real layer-3/4 shapes.
_VMEM_LIMIT = 32 * 1024 * 1024


def _row_tile(m, target=_TM_TARGET):
    """Row tile for the pointwise GEMMs (cdiv grid, Pallas masks the tail)."""
    return m if m <= target else target


# ---------------------------------------------------------------------------
# Kernel 1: fused conv1(1x1)+bn1+relu  +  conv2(3x3)+bn2+relu  (one image/step)
# ---------------------------------------------------------------------------
def _fused_conv1_conv2_kernel(stride, h, w, wp_pad, ho, wo,
                              x_ref, w1_ref, b1_ref, w2_ref, b2_ref, o_ref):
    planes = w1_ref.shape[1]
    hp = h + 2
    cdt = w2_ref.dtype

    # conv1 (1x1) + bn1(folded) + relu, computed on the zero-padded image.
    y = jnp.dot(x_ref[0], w1_ref[...], preferred_element_type=jnp.float32)
    y = jnp.maximum(y + b1_ref[...], 0.0)
    y = y.astype(cdt).reshape(hp, wp_pad, planes)

    # Re-zero the padding border: the padded x pixels are zero, but
    # relu(b1) generally is not, and conv2 must see exact zero padding.
    row = jax.lax.broadcasted_iota(jnp.int32, (hp, wp_pad, planes), 0)
    col = jax.lax.broadcasted_iota(jnp.int32, (hp, wp_pad, planes), 1)
    interior = (row >= 1) & (row <= h) & (col >= 1) & (col <= w)
    y = jnp.where(interior, y, jnp.zeros_like(y))

    # im2col: 9 shifted taps -> (Ho*Wo, 9*planes), then ONE GEMM (full-K MXU).
    taps = []
    for dy in range(3):
        for dx in range(3):
            if stride == 1:
                taps.append(y[dy:dy + ho, dx:dx + wo, :])
            else:
                # TODO(synk): strided tap subsample for stride>1 via lax.slice;
                # untested path at these shapes.
                taps.append(jax.lax.slice(
                    y, (dy, dx, 0),
                    (dy + stride * (ho - 1) + 1, dx + stride * (wo - 1) + 1,
                     planes),
                    (stride, stride, 1)))
    patches = jnp.concatenate(taps, axis=-1).reshape(ho * wo, 9 * planes)

    out = jnp.dot(patches, w2_ref[...], preferred_element_type=jnp.float32)
    out = jnp.maximum(out + b2_ref[...], 0.0)
    o_ref[0] = out.astype(o_ref.dtype)


def fused_conv1_conv2(xp_flat, w1, b1, w2r, b2, stride, h, w, wp_pad, *,
                      out_dtype):
    n, hpwp, cin = xp_flat.shape
    planes = w1.shape[1]
    ho = (h + 2 - 3) // stride + 1
    wo = (w + 2 - 3) // stride + 1
    return pl.pallas_call(
        functools.partial(_fused_conv1_conv2_kernel, stride, h, w, wp_pad,
                          ho, wo),
        out_shape=jax.ShapeDtypeStruct((n, ho * wo, planes), out_dtype),
        grid_spec=pltpu.PrefetchScalarGridSpec(
            num_scalar_prefetch=0,
            grid=(n,),
            in_specs=[
                pl.BlockSpec((1, hpwp, cin), lambda b: (b, 0, 0)),
                # Weights / biases: constant index_map -> VMEM resident.
                # TODO(synk): pipeline_mode=pl.Buffered(1) on v7x to reclaim
                # the second buffer of these constant blocks.
                pl.BlockSpec((cin, planes), lambda b: (0, 0)),
                pl.BlockSpec((1, planes), lambda b: (0, 0)),
                pl.BlockSpec((9 * planes, planes), lambda b: (0, 0)),
                pl.BlockSpec((1, planes), lambda b: (0, 0)),
            ],
            out_specs=pl.BlockSpec((1, ho * wo, planes), lambda b: (b, 0, 0)),
        ),
        compiler_params=pltpu.CompilerParams(
            dimension_semantics=("parallel",),
            vmem_limit_bytes=_VMEM_LIMIT),
    )(xp_flat, w1, b1, w2r, b2)


# ---------------------------------------------------------------------------
# Kernel 2: fused conv3(1x1)+bn3 + shortcut(conv+bn | identity) + add + ReLU
# ---------------------------------------------------------------------------
def _pw_residual_kernel(has_sc_conv, y_ref, w3_ref, b3_ref, xs_ref, *rest):
    if has_sc_conv:
        ws_ref, bs_ref, o_ref = rest
    else:
        (o_ref,) = rest
    acc = jnp.dot(y_ref[...], w3_ref[...], preferred_element_type=jnp.float32)
    acc = acc + b3_ref[...]
    if has_sc_conv:
        sc = jnp.dot(xs_ref[...], ws_ref[...],
                     preferred_element_type=jnp.float32)
        sc = sc + bs_ref[...]
    else:
        sc = xs_ref[...].astype(jnp.float32)
    o_ref[...] = jnp.maximum(acc + sc, 0.0).astype(o_ref.dtype)


def pw_conv_bn_residual_relu(y2d, w3, b3, xs2d, ws=None, bs=None, *,
                             out_dtype):
    m, planes = y2d.shape
    cout = w3.shape[1]
    csc = xs2d.shape[1]
    tm = _row_tile(m)
    has_sc_conv = ws is not None
    in_specs = [
        pl.BlockSpec((tm, planes), lambda i: (i, 0)),
        pl.BlockSpec((planes, cout), lambda i: (0, 0)),
        pl.BlockSpec((1, cout), lambda i: (0, 0)),
        pl.BlockSpec((tm, csc), lambda i: (i, 0)),
    ]
    args = [y2d, w3, b3, xs2d]
    if has_sc_conv:
        in_specs += [
            pl.BlockSpec((csc, cout), lambda i: (0, 0)),
            pl.BlockSpec((1, cout), lambda i: (0, 0)),
        ]
        args += [ws, bs]
    return pl.pallas_call(
        functools.partial(_pw_residual_kernel, has_sc_conv),
        out_shape=jax.ShapeDtypeStruct((m, cout), out_dtype),
        grid_spec=pltpu.PrefetchScalarGridSpec(
            num_scalar_prefetch=0,
            grid=(pl.cdiv(m, tm),),
            in_specs=in_specs,
            out_specs=pl.BlockSpec((tm, cout), lambda i: (i, 0)),
        ),
        compiler_params=pltpu.CompilerParams(
            dimension_semantics=("parallel",),
            vmem_limit_bytes=_VMEM_LIMIT),
    )(*args)


# ---------------------------------------------------------------------------
# Bottleneck module (parameters + forward)
# ---------------------------------------------------------------------------
def fold_bn(gamma, beta, mean, var):
    scale = gamma / jnp.sqrt(var + EPS)
    bias = beta - mean * scale
    return scale.astype(jnp.float32), bias.astype(jnp.float32)


def init_params(key, in_planes, planes, stride):
    out_planes = EXPANSION * planes
    ks = jax.random.split(key, 8)
    p = {
        # 1x1 conv weights stored (Cin, Cout); 3x3 stored (3, 3, Cin, Cout).
        "w1": 0.1 * jax.random.normal(ks[0], (in_planes, planes), jnp.float32),
        "w2": 0.1 * jax.random.normal(ks[1], (3, 3, planes, planes), jnp.float32),
        "w3": 0.1 * jax.random.normal(ks[2], (planes, out_planes), jnp.float32),
    }
    for i, (name, c) in enumerate([("bn1", planes), ("bn2", planes),
                                   ("bn3", out_planes)]):
        kk = jax.random.split(ks[3 + i], 4)
        p[name] = dict(
            gamma=1.0 + 0.1 * jax.random.normal(kk[0], (c,), jnp.float32),
            beta=0.1 * jax.random.normal(kk[1], (c,), jnp.float32),
            mean=0.1 * jax.random.normal(kk[2], (c,), jnp.float32),
            var=1.0 + 0.1 * jnp.abs(jax.random.normal(kk[3], (c,), jnp.float32)),
        )
    p["has_shortcut_conv"] = (stride != 1) or (in_planes != out_planes)
    if p["has_shortcut_conv"]:
        p["ws"] = 0.1 * jax.random.normal(ks[6], (in_planes, out_planes),
                                          jnp.float32)
        kk = jax.random.split(ks[7], 4)
        p["bns"] = dict(
            gamma=1.0 + 0.1 * jax.random.normal(kk[0], (out_planes,), jnp.float32),
            beta=0.1 * jax.random.normal(kk[1], (out_planes,), jnp.float32),
            mean=0.1 * jax.random.normal(kk[2], (out_planes,), jnp.float32),
            var=1.0 + 0.1 * jnp.abs(jax.random.normal(kk[3], (out_planes,),
                                                      jnp.float32)),
        )
    return p


def bottleneck_forward(x_nchw, params, stride, compute_dtype=jnp.bfloat16):
    x = jnp.transpose(x_nchw, (0, 2, 3, 1))  # NCHW -> NHWC
    n, h, w, cin = x.shape
    planes = params["w1"].shape[1]
    out_planes = EXPANSION * planes

    s1, b1 = fold_bn(**params["bn1"])
    s2, b2 = fold_bn(**params["bn2"])
    s3, b3 = fold_bn(**params["bn3"])

    # Fold BN scale into conv weights (inference BN); cast matmul operand
    # streams to compute_dtype; biases stay f32.
    w1 = (params["w1"] * s1[None, :]).astype(compute_dtype)
    w2r = (params["w2"] * s2[None, None, None, :]).reshape(
        9 * planes, planes).astype(compute_dtype)
    w3 = (params["w3"] * s3[None, :]).astype(compute_dtype)
    xc = x.astype(compute_dtype)

    # Pad the input once (height +1/+1, width +1 and rounded up to a multiple
    # of 8 so the in-kernel (flat <-> spatial) reshapes stay tile-aligned).
    wp_pad = ((w + 2 + 7) // 8) * 8
    xp = jnp.pad(xc, ((0, 0), (1, 1), (1, wp_pad - w - 1), (0, 0)))
    xp_flat = xp.reshape(n, (h + 2) * wp_pad, cin)

    ho = (h + 2 - 3) // stride + 1
    wo = (w + 2 - 3) // stride + 1

    # Fused conv1 + conv2 (bn1/bn2 folded, ReLUs in-kernel).
    y = fused_conv1_conv2(xp_flat, w1, b1.reshape(1, -1), w2r,
                          b2.reshape(1, -1), stride, h, w, wp_pad,
                          out_dtype=compute_dtype)
    y2d = y.reshape(n * ho * wo, planes)

    # Fused conv3 + bn3 + shortcut + residual add + ReLU.
    # TODO(synk): express the stride>1 shortcut subsample via the shortcut
    # input's BlockSpec index_map instead of a wrapper-level strided slice.
    xs = xc if stride == 1 else xc[:, ::stride, ::stride, :]
    if params["has_shortcut_conv"]:
        ss, bs = fold_bn(**params["bns"])
        ws = (params["ws"] * ss[None, :]).astype(compute_dtype)
        out2d = pw_conv_bn_residual_relu(
            y2d, w3, b3.reshape(1, -1), xs.reshape(n * ho * wo, cin),
            ws, bs.reshape(1, -1), out_dtype=compute_dtype)
    else:
        out2d = pw_conv_bn_residual_relu(
            y2d, w3, b3.reshape(1, -1), xs.reshape(n * ho * wo, out_planes),
            out_dtype=compute_dtype)

    out = out2d.reshape(n, ho, wo, out_planes)
    return jnp.transpose(out, (0, 3, 1, 2))  # NHWC -> NCHW


# ---------------------------------------------------------------------------
# Pure-JAX reference (NHWC convs) for correctness checking
# ---------------------------------------------------------------------------
def _bn_ref(x, bn):
    return (x - bn["mean"]) / jnp.sqrt(bn["var"] + EPS) * bn["gamma"] + bn["beta"]


def ref_forward(x_nchw, params, stride):
    x = jnp.transpose(x_nchw, (0, 2, 3, 1))
    dn = ("NHWC", "HWIO", "NHWC")
    cin = x.shape[-1]
    planes = params["w1"].shape[1]

    out = jax.lax.conv_general_dilated(
        x, params["w1"].reshape(1, 1, cin, planes), (1, 1), "VALID",
        dimension_numbers=dn)
    out = jax.nn.relu(_bn_ref(out, params["bn1"]))
    out = jax.lax.conv_general_dilated(
        out, params["w2"], (stride, stride), ((1, 1), (1, 1)),
        dimension_numbers=dn)
    out = jax.nn.relu(_bn_ref(out, params["bn2"]))
    out = jax.lax.conv_general_dilated(
        out, params["w3"].reshape(1, 1, planes, -1), (1, 1), "VALID",
        dimension_numbers=dn)
    out = _bn_ref(out, params["bn3"])
    if params["has_shortcut_conv"]:
        sc = jax.lax.conv_general_dilated(
            x, params["ws"].reshape(1, 1, cin, -1), (stride, stride), "VALID",
            dimension_numbers=dn)
        sc = _bn_ref(sc, params["bns"])
    else:
        sc = x[:, ::stride, ::stride, :]
    out = jax.nn.relu(out + sc)
    return jnp.transpose(out, (0, 3, 1, 2))


# ---------------------------------------------------------------------------
if __name__ == "__main__":
    in_planes, planes, stride = 4, 4, 1      # shortcut has conv+bn (4 != 16)
    n, h, w = 2, 16, 16

    key = jax.random.PRNGKey(0)
    kx, kp = jax.random.split(key)
    x = jax.random.normal(kx, (n, in_planes, h, w), jnp.float32)   # NCHW input
    params = init_params(kp, in_planes, planes, stride)

    ref = jax.block_until_ready(ref_forward(x, params, stride))
    scale = float(jnp.max(jnp.abs(ref))) + 1e-6

    # f32 streams: tight relative check against the pure-JAX/XLA reference.
    out_f32 = jax.block_until_ready(
        bottleneck_forward(x, params, stride, compute_dtype=jnp.float32))
    assert out_f32.shape == (n, EXPANSION * planes, h // stride, w // stride)
    rel_f32 = float(jnp.max(jnp.abs(out_f32.astype(jnp.float32) - ref))) / scale
    assert rel_f32 < 1e-2, f"f32 relative max diff {rel_f32}"

    # bf16 streams (production path): relative-error check.
    out_bf16 = jax.block_until_ready(
        bottleneck_forward(x, params, stride, compute_dtype=jnp.bfloat16))
    rel_bf16 = float(jnp.max(jnp.abs(out_bf16.astype(jnp.float32) - ref))) / scale
    assert rel_bf16 < 5e-2, f"bf16 relative max diff {rel_bf16}"

    print("KERNEL_OK")
</pallas_src>

<mosaic_0001>
module attributes {stable_mosaic.version = 11 : i64} {
  func.func @_fused_conv1_conv2_kernel(%arg0: i32, %arg1: memref<1x432x4xf32, #tpu.memory_space<vmem>>, %arg2: memref<4x4xf32, #tpu.memory_space<vmem>>, %arg3: memref<1x4xf32, #tpu.memory_space<vmem>>, %arg4: memref<36x4xf32, #tpu.memory_space<vmem>>, %arg5: memref<1x4xf32, #tpu.memory_space<vmem>>, %arg6: memref<1x256x4xf32, #tpu.memory_space<vmem>>) attributes {dimension_semantics = [#tpu.dimension_semantics<parallel>], iteration_bounds = array<i64: 2>, scalar_prefetch = 0 : i64, scratch_operands = 0 : i64, tpu.core_type = #tpu.core_type<tc>, window_params = [{transform_indices = @transform_0, window_bounds = array<i64: 1, 432, 4>}, {pipeline_mode = #tpu.pipeline_mode<synchronous>, transform_indices = @transform_1, window_bounds = array<i64: 4, 4>}, {pipeline_mode = #tpu.pipeline_mode<synchronous>, transform_indices = @transform_2, window_bounds = array<i64: 1, 4>}, {pipeline_mode = #tpu.pipeline_mode<synchronous>, transform_indices = @transform_3, window_bounds = array<i64: 36, 4>}, {pipeline_mode = #tpu.pipeline_mode<synchronous>, transform_indices = @transform_4, window_bounds = array<i64: 1, 4>}, {transform_indices = @transform_5, window_bounds = array<i64: 1, 256, 4>}]} {
    %c0 = arith.constant 0 : index
    %c0_0 = arith.constant 0 : index
    %c0_1 = arith.constant 0 : index
    %0 = vector.load %arg1[%c0, %c0_0, %c0_1] : memref<1x432x4xf32, #tpu.memory_space<vmem>>, vector<1x432x4xf32>
    %1 = vector.shape_cast %0 : vector<1x432x4xf32> to vector<432x4xf32>
    %c0_2 = arith.constant 0 : index
    %c0_3 = arith.constant 0 : index
    %2 = vector.load %arg2[%c0_2, %c0_3] : memref<4x4xf32, #tpu.memory_space<vmem>>, vector<4x4xf32>
    %cst = arith.constant dense<0.000000e+00> : vector<432x4xf32>
    %3 = tpu.matmul %1, %2, %cst {dimension_numbers = #tpu.dot_dimension_numbers<[1], [0], [0], [1], [0, 0, 1, 1], [], []>} : vector<432x4xf32>, vector<4x4xf32>, vector<432x4xf32> -> vector<432x4xf32>
    %c0_4 = arith.constant 0 : index
    %c0_5 = arith.constant 0 : index
    %4 = vector.load %arg3[%c0_4, %c0_5] : memref<1x4xf32, #tpu.memory_space<vmem>>, vector<1x4xf32>
    %5 = vector.broadcast %4 : vector<1x4xf32> to vector<432x4xf32>
    %6 = arith.addf %3, %5 : vector<432x4xf32>
    %cst_6 = arith.constant 0.000000e+00 : f32
    %7 = vector.broadcast %cst_6 : f32 to vector<432x4xf32>
    %8 = arith.maximumf %6, %7 : vector<432x4xf32>
    %9 = vector.shape_cast %8 : vector<432x4xf32> to vector<18x24x4xf32>
    %10 = tpu.iota {dimensions = array<i32: 0>} : vector<18x24x4xi32>
    %11 = tpu.iota {dimensions = array<i32: 1>} : vector<18x24x4xi32>
    %c1_i32 = arith.constant 1 : i32
    %12 = vector.broadcast %c1_i32 : i32 to vector<18x24x4xi32>
    %13 = arith.cmpi sge, %10, %12 : vector<18x24x4xi32>
    %c16_i32 = arith.constant 16 : i32
    %14 = vector.broadcast %c16_i32 : i32 to vector<18x24x4xi32>
    %15 = arith.cmpi sle, %10, %14 : vector<18x24x4xi32>
    %16 = arith.andi %13, %15 : vector<18x24x4xi1>
    %c1_i32_7 = arith.constant 1 : i32
    %17 = vector.broadcast %c1_i32_7 : i32 to vector<18x24x4xi32>
    %18 = arith.cmpi sge, %11, %17 : vector<18x24x4xi32>
    %19 = arith.andi %16, %18 : vector<18x24x4xi1>
    %c16_i32_8 = arith.constant 16 : i32
    %20 = vector.broadcast %c16_i32_8 : i32 to vector<18x24x4xi32>
    %21 = arith.cmpi sle, %11, %20 : vector<18x24x4xi32>
    %22 = arith.andi %19, %21 : vector<18x24x4xi1>
    %cst_9 = arith.constant 0.000000e+00 : f32
    %23 = vector.broadcast %cst_9 : f32 to vector<18x24x4xf32>
    %24 = arith.select %22, %9, %23 : vector<18x24x4xi1>, vector<18x24x4xf32>
    %25 = vector.extract_strided_slice %24 {offsets = [0, 0, 0], sizes = [16, 16, 4], strides = [1, 1, 1]} : vector<18x24x4xf32> to vector<16x16x4xf32>
    %26 = vector.extract_strided_slice %24 {offsets = [0, 1, 0], sizes = [16, 16, 4], strides = [1, 1, 1]} : vector<18x24x4xf32> to vector<16x16x4xf32>
    %27 = vector.extract_strided_slice %24 {offsets = [0, 2, 0], sizes = [16, 16, 4], strides = [1, 1, 1]} : vector<18x24x4xf32> to vector<16x16x4xf32>
    %28 = vector.extract_strided_slice %24 {offsets = [1, 0, 0], sizes = [16, 16, 4], strides = [1, 1, 1]} : vector<18x24x4xf32> to vector<16x16x4xf32>
    %29 = vector.extract_strided_slice %24 {offsets = [1, 1, 0], sizes = [16, 16, 4], strides = [1, 1, 1]} : vector<18x24x4xf32> to vector<16x16x4xf32>
    %30 = vector.extract_strided_slice %24 {offsets = [1, 2, 0], sizes = [16, 16, 4], strides = [1, 1, 1]} : vector<18x24x4xf32> to vector<16x16x4xf32>
    %31 = vector.extract_strided_slice %24 {offsets = [2, 0, 0], sizes = [16, 16, 4], strides = [1, 1, 1]} : vector<18x24x4xf32> to vector<16x16x4xf32>
    %32 = vector.extract_strided_slice %24 {offsets = [2, 1, 0], sizes = [16, 16, 4], strides = [1, 1, 1]} : vector<18x24x4xf32> to vector<16x16x4xf32>
    %33 = vector.extract_strided_slice %24 {offsets = [2, 2, 0], sizes = [16, 16, 4], strides = [1, 1, 1]} : vector<18x24x4xf32> to vector<16x16x4xf32>
    %34 = tpu.concatenate %25, %26, %27, %28, %29, %30, %31, %32, %33 in 2 : vector<16x16x4xf32>, vector<16x16x4xf32>, vector<16x16x4xf32>, vector<16x16x4xf32>, vector<16x16x4xf32>, vector<16x16x4xf32>, vector<16x16x4xf32>, vector<16x16x4xf32>, vector<16x16x4xf32> -> vector<16x16x36xf32>
    %35 = vector.shape_cast %34 : vector<16x16x36xf32> to vector<256x36xf32>
    %c0_10 = arith.constant 0 : index
    %c0_11 = arith.constant 0 : index
    %36 = vector.load %arg4[%c0_10, %c0_11] : memref<36x4xf32, #tpu.memory_space<vmem>>, vector<36x4xf32>
    %cst_12 = arith.constant dense<0.000000e+00> : vector<256x4xf32>
    %37 = tpu.matmul %35, %36, %cst_12 {dimension_numbers = #tpu.dot_dimension_numbers<[1], [0], [0], [1], [0, 0, 1, 1], [], []>} : vector<256x36xf32>, vector<36x4xf32>, vector<256x4xf32> -> vector<256x4xf32>
    %c0_13 = arith.constant 0 : index
    %c0_14 = arith.constant 0 : index
    %38 = vector.load %arg5[%c0_13, %c0_14] : memref<1x4xf32, #tpu.memory_space<vmem>>, vector<1x4xf32>
    %39 = vector.broadcast %38 : vector<1x4xf32> to vector<256x4xf32>
    %40 = arith.addf %37, %39 : vector<256x4xf32>
    %cst_15 = arith.constant 0.000000e+00 : f32
    %41 = vector.broadcast %cst_15 : f32 to vector<256x4xf32>
    %42 = arith.maximumf %40, %41 : vector<256x4xf32>
    %c0_16 = arith.constant 0 : index
    %c0_17 = arith.constant 0 : index
    %c0_18 = arith.constant 0 : index
    %43 = vector.load %arg6[%c0_16, %c0_17, %c0_18] : memref<1x256x4xf32, #tpu.memory_space<vmem>>, vector<1x256x4xf32>
    %44 = vector.shape_cast %43 : vector<1x256x4xf32> to vector<256x4xf32>
    %45 = vector.shape_cast %42 : vector<256x4xf32> to vector<1x256x4xf32>
    tpu.vector_store %arg6[%c0_16, %c0_17, %c0_18], %45 {strides = array<i32>} : memref<1x256x4xf32, #tpu.memory_space<vmem>>, vector<1x256x4xf32>,
    return
  }
  func.func @transform_0(%arg0: i32) -> (i32, i32, i32) {
    %c0_i32 = arith.constant 0 : i32
    %c0_i32_0 = arith.constant 0 : i32
    %c0_i32_1 = arith.constant 0 : i32
    return %arg0, %c0_i32, %c0_i32_0 : i32, i32, i32
  }
  func.func @transform_1(%arg0: i32) -> (i32, i32) {
    %c0_i32 = arith.constant 0 : i32
    %c0_i32_0 = arith.constant 0 : i32
    %c0_i32_1 = arith.constant 0 : i32
    return %c0_i32, %c0_i32_0 : i32, i32
  }
  func.func @transform_2(%arg0: i32) -> (i32, i32) {
    %c0_i32 = arith.constant 0 : i32
    %c0_i32_0 = arith.constant 0 : i32
    %c0_i32_1 = arith.constant 0 : i32
    return %c0_i32, %c0_i32_0 : i32, i32
  }
  func.func @transform_3(%arg0: i32) -> (i32, i32) {
    %c0_i32 = arith.constant 0 : i32
    %c0_i32_0 = arith.constant 0 : i32
    %c0_i32_1 = arith.constant 0 : i32
    return %c0_i32, %c0_i32_0 : i32, i32
  }
  func.func @transform_4(%arg0: i32) -> (i32, i32) {
    %c0_i32 = arith.constant 0 : i32
    %c0_i32_0 = arith.constant 0 : i32
    %c0_i32_1 = arith.constant 0 : i32
    return %c0_i32, %c0_i32_0 : i32, i32
  }
  func.func @transform_5(%arg0: i32) -> (i32, i32, i32) {
    %c0_i32 = arith.constant 0 : i32
    %c0_i32_0 = arith.constant 0 : i32
    %c0_i32_1 = arith.constant 0 : i32
    return %arg0, %c0_i32, %c0_i32_0 : i32, i32, i32
  }
}

</mosaic_0001>

<llo_original>
// kernel: tpu_custom_call.1
$region0: #{tpu_custom_call.1}
  #allocation0 [shape = 'u32[]', space=smem, size = 0x4, offset = 0x4, fixed_abs, tag = 'smem constant byte address 0x4 - core index']
  #allocation1 [shape = 'u32[144,128]{1,0:T(1,128)}', space=vmem, size = 0x12000, scoped, tag = 'internal scratch']
  %s0 = inlined_call_operand.vmem [shape: f32[2,432,4], index: 0, kind: input, shape index: {}]
  %s1 = inlined_call_operand.vmem [shape: f32[4,4], index: 1, kind: input, shape index: {}]
  %s2 = inlined_call_operand.vmem [shape: f32[1,4], index: 2, kind: input, shape index: {}]
  %s3 = inlined_call_operand.vmem [shape: f32[36,4], index: 3, kind: input, shape index: {}]
  %s4 = inlined_call_operand.vmem [shape: f32[1,4], index: 4, kind: input, shape index: {}]
  %s5 = inlined_call_operand.vmem [shape: f32[2,256,4], index: 5, kind: output, shape index: {}]
  %s6 = sld [smem:[#allocation0]]
  $region53: #{tpu_custom_call.1} parent=0
    _
  %s8 = ssub.s32 1, %s6
  %s9 = scalar_select 0, %s8, %s6
  loop: start=0, step=1, limit=4
  $region2: #{tpu_custom_call.1} parent=0 // loop_pre_header
    _
  $region3: #{tpu_custom_call.1} parent=0 // loop_header
    %s11 = sphi 0, %s15
    %p12 = scmp.ge.s32.totalorder %s11, 4
    %s21 = sphi 0, %s23
    %s24 = sphi 0, %s21
    %s25 = sphi 0, %s24
    %s41 = sphi 0, %s25
    %s45 = sphi 0, %s45
    %s47 = sphi 0, %s45
    %s48 = sphi 0, %s47
    %s62 = sphi 0, %s48
    %s66 = sphi 0, %s66
    %s68 = sphi 0, %s66
    %s69 = sphi 0, %s68
    %s83 = sphi 0, %s69
    %s87 = sphi 0, %s87
    %s89 = sphi 0, %s87
    %s90 = sphi 0, %s89
    %s104 = sphi 0, %s90
    %s108 = sphi 0, %s108
    %s110 = sphi 0, %s108
    %s111 = sphi 0, %s110
    %s125 = sphi 0, %s111
    %s131 = sphi 0, %s133
    %s134 = sphi 0, %s131
    %s135 = sphi 0, %s134
    %s151 = sphi 0, %s135
  $region4: #{tpu_custom_call.1} parent=0 // loop_header_branch
    %14 = sbr.rel (%p12) target = $region8
  $region5: #{tpu_custom_call.1} parent=0 // loop_body
    %s16 = ssub.s32 %s11, 1
    %s17 = ssub.s32 %s11, 2
    %s18 = sadd.s32 %s11, 1
    %s19 = ssub.s32 %s11, %s18
    %p20 = scmp.eq.s32.totalorder %s19, 0
    %s22 = sadd.s32 %s21, 1
    %s23 = scalar_select %p20, %s21, %s22
    %p26 = pneg %p20
    %p27 = scmp.eq.s32.totalorder %s11, 1
    %p28 = por %p26, %p27
    %p29 = scmp.ne.s32.totalorder %s21, %s24
    %p30 = scmp.eq.s32.totalorder %s11, 0
    %p31 = por %p29, %p30
    %p32 = scmp.ne.s32.totalorder %s21, %s24
    %p33 = scmp.eq.s32.totalorder %s16, 1
    %p34 = por %p32, %p33
    %p35 = scmp.ne.s32.totalorder %s24, %s25
    %p36 = scmp.eq.s32.totalorder %s16, 0
    %p37 = por %p35, %p36
    %p38 = scmp.ne.s32.totalorder %s24, %s25
    %p39 = scmp.eq.s32.totalorder %s17, 1
    %p40 = por %p38, %p39
    %p42 = scmp.ne.s32.totalorder %s25, %s41
    %p43 = scmp.eq.s32.totalorder %s17, 0
    %p44 = por %p42, %p43
    %s46 = sadd.s32 %s45, 1
    %p49 = scmp.eq.s32.totalorder %s11, 1
    %p50 = scmp.ne.s32.totalorder %s45, %s47
    %p51 = scmp.eq.s32.totalorder %s11, 0
    %p52 = por %p50, %p51
    %p53 = scmp.ne.s32.totalorder %s45, %s47
    %p54 = scmp.eq.s32.totalorder %s16, 1
    %p55 = por %p53, %p54
    %p56 = scmp.ne.s32.totalorder %s47, %s48
    %p57 = scmp.eq.s32.totalorder %s16, 0
    %p58 = por %p56, %p57
    %p59 = scmp.ne.s32.totalorder %s47, %s48
    %p60 = scmp.eq.s32.totalorder %s17, 1
    %p61 = por %p59, %p60
    %p63 = scmp.ne.s32.totalorder %s48, %s62
    %p64 = scmp.eq.s32.totalorder %s17, 0
    %p65 = por %p63, %p64
    %s67 = sadd.s32 %s66, 1
    %p70 = scmp.eq.s32.totalorder %s11, 1
    %p71 = scmp.ne.s32.totalorder %s66, %s68
    %p72 = scmp.eq.s32.totalorder %s11, 0
    %p73 = por %p71, %p72
    %p74 = scmp.ne.s32.totalorder %s66, %s68
    %p75 = scmp.eq.s32.totalorder %s16, 1
    %p76 = por %p74, %p75
    %p77 = scmp.ne.s32.totalorder %s68, %s69
    %p78 = scmp.eq.s32.totalorder %s16, 0
    %p79 = por %p77, %p78
    %p80 = scmp.ne.s32.totalorder %s68, %s69
    %p81 = scmp.eq.s32.totalorder %s17, 1
    %p82 = por %p80, %p81
    %p84 = scmp.ne.s32.totalorder %s69, %s83
    %p85 = scmp.eq.s32.totalorder %s17, 0
    %p86 = por %p84, %p85
    %s88 = sadd.s32 %s87, 1
    %p91 = scmp.eq.s32.totalorder %s11, 1
    %p92 = scmp.ne.s32.totalorder %s87, %s89
    %p93 = scmp.eq.s32.totalorder %s11, 0
    %p94 = por %p92, %p93
    %p95 = scmp.ne.s32.totalorder %s87, %s89
    %p96 = scmp.eq.s32.totalorder %s16, 1
    %p97 = por %p95, %p96
    %p98 = scmp.ne.s32.totalorder %s89, %s90
    %p99 = scmp.eq.s32.totalorder %s16, 0
    %p100 = por %p98, %p99
    %p101 = scmp.ne.s32.totalorder %s89, %s90
    %p102 = scmp.eq.s32.totalorder %s17, 1
    %p103 = por %p101, %p102
    %p105 = scmp.ne.s32.totalorder %s90, %s104
    %p106 = scmp.eq.s32.totalorder %s17, 0
    %p107 = por %p105, %p106
    %s109 = sadd.s32 %s108, 1
    %p112 = scmp.eq.s32.totalorder %s11, 1
    %p113 = scmp.ne.s32.totalorder %s108, %s110
    %p114 = scmp.eq.s32.totalorder %s11, 0
    %p115 = por %p113, %p114
    %p116 = scmp.ne.s32.totalorder %s108, %s110
    %p117 = scmp.eq.s32.totalorder %s16, 1
    %p118 = por %p116, %p117
    %p119 = scmp.ne.s32.totalorder %s110, %s111
    %p120 = scmp.eq.s32.totalorder %s16, 0
    %p121 = por %p119, %p120
    %p122 = scmp.ne.s32.totalorder %s110, %s111
    %p123 = scmp.eq.s32.totalorder %s17, 1
    %p124 = por %p122, %p123
    %p126 = scmp.ne.s32.totalorder %s111, %s125
    %p127 = scmp.eq.s32.totalorder %s17, 0
    %p128 = por %p126, %p127
    %s129 = ssub.s32 %s11, %s18
    %p130 = scmp.eq.s32.totalorder %s129, 0
    %s132 = sadd.s32 %s131, 1
    %s133 = scalar_select %p130, %s131, %s132
    %p136 = pneg %p130
    %p137 = scmp.eq.s32.totalorder %s11, 1
    %p138 = por %p136, %p137
    %p139 = scmp.ne.s32.totalorder %s131, %s134
    %p140 = scmp.eq.s32.totalorder %s11, 0
    %p141 = por %p139, %p140
    %p142 = scmp.ne.s32.totalorder %s131, %s134
    %p143 = scmp.eq.s32.totalorder %s16, 1
    %p144 = por %p142, %p143
    %p145 = scmp.ne.s32.totalorder %s134, %s135
    %p146 = scmp.eq.s32.totalorder %s16, 0
    %p147 = por %p145, %p146
    %p148 = scmp.ne.s32.totalorder %s134, %s135
    %p149 = scmp.eq.s32.totalorder %s17, 1
    %p150 = por %p148, %p149
    %p152 = scmp.ne.s32.totalorder %s135, %s151
    %p153 = scmp.eq.s32.totalorder %s17, 0
    %p154 = por %p152, %p153
    %p155 = scmp.le.s32.totalorder 1, %s11
    %p156 = scmp.lt.s32.totalorder %s11, 3
    %p157 = pnand %p155, %p156
    %p158 = pneg %p157
    // Predicated region
    $region9: #{tpu_custom_call.1} parent=5 // pred_check
      _
    $region10: #{tpu_custom_call.1} parent=5 // pred_check_branch
      %160 = sbr.rel (%p157) target = $region12
    $region11: #{tpu_custom_call.1} parent=5 // pred_region
      %s161 = ssub.s32 %s11, 1
      // Predicated region
      $region13: #{tpu_custom_call.1} parent=11 // pred_check
        %p162 = pneg %p58
      $region14: #{tpu_custom_call.1} parent=11 // pred_check_branch
        %164 = sbr.rel (%p162) target = $region16
      $region15: #{tpu_custom_call.1} parent=11 // pred_region
        _
      $region16: #{tpu_custom_call.1} parent=11 // pred_fallthru
        _
      // Predicated region
      $region17: #{tpu_custom_call.1} parent=11 // pred_check
        %p165 = pneg %p79
      $region18: #{tpu_custom_call.1} parent=11 // pred_check_branch
        %167 = sbr.rel (%p165) target = $region20
      $region19: #{tpu_custom_call.1} parent=11 // pred_region
        _
      $region20: #{tpu_custom_call.1} parent=11 // pred_fallthru
        _
      // Predicated region
      $region21: #{tpu_custom_call.1} parent=11 // pred_check
        %p168 = pneg %p100
      $region22: #{tpu_custom_call.1} parent=11 // pred_check_branch
        %170 = sbr.rel (%p168) target = $region24
      $region23: #{tpu_custom_call.1} parent=11 // pred_region
        _
      $region24: #{tpu_custom_call.1} parent=11 // pred_fallthru
        _
      // Predicated region
      $region25: #{tpu_custom_call.1} parent=11 // pred_check
        %p171 = pneg %p121
      $region26: #{tpu_custom_call.1} parent=11 // pred_check_branch
        %173 = sbr.rel (%p171) target = $region28
      $region27: #{tpu_custom_call.1} parent=11 // pred_region
        _
      $region28: #{tpu_custom_call.1} parent=11 // pred_fallthru
        _
    $region12: #{tpu_custom_call.1} parent=5 // pred_fallthru
      _
    %p174 = scmp.lt.s32.totalorder %s11, 2
    // Predicated region
    $region29: #{tpu_custom_call.1} parent=5 // pred_check
      %p175 = pneg %p174
    $region30: #{tpu_custom_call.1} parent=5 // pred_check_branch
      %177 = sbr.rel (%p175) target = $region32
    $region31: #{tpu_custom_call.1} parent=5 // pred_region
      // Predicated region
      $region33: #{tpu_custom_call.1} parent=31 // pred_check
        %p178 = pneg %p31
      $region34: #{tpu_custom_call.1} parent=31 // pred_check_branch
        %180 = sbr.rel (%p178) target = $region36
      $region35: #{tpu_custom_call.1} parent=31 // pred_region
        %p181 = scmp.lt.s32.totalorder %s11, 1
        %s182 = scalar_select %p181, %s11, 1
        %s183 = smul.addr %s182, 54
        %s184 = smul.addr %s183, 8
        %s185 = scalar_lea.vmem %s0, %s184
      $region36: #{tpu_custom_call.1} parent=31 // pred_fallthru
        _
    $region32: #{tpu_custom_call.1} parent=5 // pred_fallthru
      _
    %p186 = scmp.le.s32.totalorder 1, %s11
    %p187 = scmp.lt.s32.totalorder %s11, 3
    %p188 = pnand %p186, %p187
    %p189 = pneg %p188
    // Predicated region
    $region37: #{tpu_custom_call.1} parent=5 // pred_check
      _
    $region38: #{tpu_custom_call.1} parent=5 // pred_check_branch
      %191 = sbr.rel (%p188) target = $region40
    $region39: #{tpu_custom_call.1} parent=5 // pred_region
      %s192 = ssub.s32 %s11, 1
      %p193 = scmp.lt.s32.totalorder %s16, 1
      %s194 = scalar_select %p193, %s16, 1
      %s195 = smul.addr %s194, 54
      %s196 = smul.addr %s195, 8
      %s197 = scalar_lea.vmem %s0, %s196
      %p198 = pneg %p37
      %p199 = pneg %p34
      %p200 = pneg %p58
      %p201 = pneg %p55
      %p202 = pneg %p79
      %p203 = pneg %p76
      %p204 = pneg %p100
      %p205 = pneg %p97
      %p206 = pneg %p121
      %p207 = pneg %p118
      %p208 = pneg %p147
      %p209 = pneg %p144
      %p210 = scmp.lt.s32.totalorder %s16, 1
      %s211 = scalar_select %p210, %s16, 1
      %s212 = smul.addr %s211, 32
      %s213 = smul.addr %s212, 8
      %s214 = scalar_lea.vmem %s5, %s213
      %p215 = scmp.lt.s32.totalorder %s16, 1
      %s216 = scalar_select %p215, %s16, 1
      %s217 = smul.addr %s216, 54
      %s218 = smul.addr %s217, 8
      %s219 = scalar_lea.vmem %s0, %s218
      %p220 = scmp.lt.s32.totalorder %s16, 1
      %s221 = scalar_select %p220, %s16, 1
      %s222 = smul.addr %s221, 32
      %s223 = smul.addr %s222, 8
      %s224 = scalar_lea.vmem %s5, %s223
      %v225 = vld [vmem:[%s219] sm:$0xff]
      %v226 = vld [vmem:[%s219 + $0x8] sm:$0xff]
      %v227 = vld [vmem:[%s219 + $0x10] sm:$0xff]
      %v228 = vld [vmem:[%s219 + $0x18] sm:$0xff]
      %v229 = vld [vmem:[%s219 + $0x20] sm:$0xff]
      %v230 = vld [vmem:[%s219 + $0x28] sm:$0xff]
      %v231 = vld [vmem:[%s219 + $0x30] sm:$0xff]
      %v232 = vld [vmem:[%s219 + $0x38] sm:$0xff]
      %v233 = vld [vmem:[%s219 + $0x40] sm:$0xff]
      %v234 = vld [vmem:[%s219 + $0x48] sm:$0xff]
      %v235 = vld [vmem:[%s219 + $0x50] sm:$0xff]
      %v236 = vld [vmem:[%s219 + $0x58] sm:$0xff]
      %v237 = vld [vmem:[%s219 + $0x60] sm:$0xff]
      %v238 = vld [vmem:[%s219 + $0x68] sm:$0xff]
      %v239 = vld [vmem:[%s219 + $0x70] sm:$0xff]
      %v240 = vld [vmem:[%s219 + $0x78] sm:$0xff]
      %v241 = vld [vmem:[%s219 + $0x80] sm:$0xff]
      %v242 = vld [vmem:[%s219 + $0x88] sm:$0xff]
      %v243 = vld [vmem:[%s219 + $0x90] sm:$0xff]
      %v244 = vld [vmem:[%s219 + $0x98] sm:$0xff]
      %v245 = vld [vmem:[%s219 + $0xa0] sm:$0xff]
      %v246 = vld [vmem:[%s219 + $0xa8] sm:$0xff]
      %v247 = vld [vmem:[%s219 + $0xb0] sm:$0xff]
      %v248 = vld [vmem:[%s219 + $0xb8] sm:$0xff]
      %v249 = vld [vmem:[%s219 + $0xc0] sm:$0xff]
      %v250 = vld [vmem:[%s219 + $0xc8] sm:$0xff]
      %v251 = vld [vmem:[%s219 + $0xd0] sm:$0xff]
      %v252 = vld [vmem:[%s219 + $0xd8] sm:$0xff]
      %v253 = vld [vmem:[%s219 + $0xe0] sm:$0xff]
      %v254 = vld [vmem:[%s219 + $0xe8] sm:$0xff]
      %v255 = vld [vmem:[%s219 + $0xf0] sm:$0xff]
      %v256 = vld [vmem:[%s219 + $0xf8] sm:$0xff]
      %v257 = vld [vmem:[%s219 + $0x100] sm:$0xff]
      %v258 = vld [vmem:[%s219 + $0x108] sm:$0xff]
      %v259 = vld [vmem:[%s219 + $0x110] sm:$0xff]
      %v260 = vld [vmem:[%s219 + $0x118] sm:$0xff]
      %v261 = vld [vmem:[%s219 + $0x120] sm:$0xff]
      %v262 = vld [vmem:[%s219 + $0x128] sm:$0xff]
      %v263 = vld [vmem:[%s219 + $0x130] sm:$0xff]
      %v264 = vld [vmem:[%s219 + $0x138] sm:$0xff]
      %v265 = vld [vmem:[%s219 + $0x140] sm:$0xff]
      %v266 = vld [vmem:[%s219 + $0x148] sm:$0xff]
      %v267 = vld [vmem:[%s219 + $0x150] sm:$0xff]
      %v268 = vld [vmem:[%s219 + $0x158] sm:$0xff]
      %v269 = vld [vmem:[%s219 + $0x160] sm:$0xff]
      %v270 = vld [vmem:[%s219 + $0x168] sm:$0xff]
      %v271 = vld [vmem:[%s219 + $0x170] sm:$0xff]
      %v272 = vld [vmem:[%s219 + $0x178] sm:$0xff]
      %v273 = vld [vmem:[%s219 + $0x180] sm:$0xff]
      %v274 = vld [vmem:[%s219 + $0x188] sm:$0xff]
      %v275 = vld [vmem:[%s219 + $0x190] sm:$0xff]
      %v276 = vld [vmem:[%s219 + $0x198] sm:$0xff]
      %v277 = vld [vmem:[%s219 + $0x1a0] sm:$0xff]
      %v278 = vld [vmem:[%s219 + $0x1a8] sm:$0xff]
      %v279 = vld [vmem:[%s1] sm:$0xf]
      %v280 = vld [vmem:[%s2] sm:$0x1]
      %v282 = vlaneseq
      %v283 = vshrl.u32 %v282, 7
      %v284 = vsub.s32 0, %v283
      %v285 = vrot.slane %v280, %v284
      %vm287 = vcmask 31744
      %v289 = vsel %vm287, %v225, 0
      %v292 = vsel %vm287, %v226, 0
      %v295 = vsel %vm287, %v227, 0
      %v298 = vsel %vm287, %v228, 0
      %v301 = vsel %vm287, %v229, 0
      %v304 = vsel %vm287, %v230, 0
      %v307 = vsel %vm287, %v231, 0
      %v310 = vsel %vm287, %v232, 0
      %v313 = vsel %vm287, %v233, 0
      %v316 = vsel %vm287, %v234, 0
      %v319 = vsel %vm287, %v235, 0
      %v322 = vsel %vm287, %v236, 0
      %v325 = vsel %vm287, %v237, 0
      %v328 = vsel %vm287, %v238, 0
      %v331 = vsel %vm287, %v239, 0
      %v334 = vsel %vm287, %v240, 0
      %v337 = vsel %vm287, %v241, 0
      %v340 = vsel %vm287, %v242, 0
      %v343 = vsel %vm287, %v243, 0
      %v346 = vsel %vm287, %v244, 0
      %v349 = vsel %vm287, %v245, 0
      %v352 = vsel %vm287, %v246, 0
      %v355 = vsel %vm287, %v247, 0
      %v358 = vsel %vm287, %v248, 0
      %v361 = vsel %vm287, %v249, 0
      %v364 = vsel %vm287, %v250, 0
      %v367 = vsel %vm287, %v251, 0
      %v370 = vsel %vm287, %v252, 0
      %v373 = vsel %vm287, %v253, 0
      %v376 = vsel %vm287, %v254, 0
      %v379 = vsel %vm287, %v255, 0
      %v382 = vsel %vm287, %v256, 0
      %v385 = vsel %vm287, %v257, 0
      %v388 = vsel %vm287, %v258, 0
      %v391 = vsel %vm287, %v259, 0
      %v394 = vsel %vm287, %v260, 0
      %v397 = vsel %vm287, %v261, 0
      %v400 = vsel %vm287, %v262, 0
      %v403 = vsel %vm287, %v263, 0
      %v406 = vsel %vm287, %v264, 0
      %v409 = vsel %vm287, %v265, 0
      %v412 = vsel %vm287, %v266, 0
      %v415 = vsel %vm287, %v267, 0
      %v418 = vsel %vm287, %v268, 0
      %v421 = vsel %vm287, %v269, 0
      %v424 = vsel %vm287, %v270, 0
      %v427 = vsel %vm287, %v271, 0
      %v430 = vsel %vm287, %v272, 0
      %v433 = vsel %vm287, %v273, 0
      %v436 = vsel %vm287, %v274, 0
      %v439 = vsel %vm287, %v275, 0
      %v442 = vsel %vm287, %v276, 0
      %v445 = vsel %vm287, %v277, 0
      %v448 = vsel %vm287, %v278, 0
      %vm450 = vcmask 1043456
      %v452 = vsel %vm450, %v279, 0
      %454 = vmatprep.subr.mxu0 0.0
      %455 = vmatpush1.msra.mxu0 %v452
      %456 = vmatprep.subr.mxu0 0.0
      %457 = vmatpush1.msra.mxu0 0.0
      %458 = vmatprep.subr.mxu0 0.0
      %459 = vmatpush1.msra.mxu0 0.0
      %460 = vmatprep.subr.mxu0 0.0
      %461 = vmatpush1.msra.mxu0 0.0
      %462 = vmatprep.subr.mxu0 0.0
      %463 = vmatpush1.msra.mxu0 0.0
      %464 = vmatprep.subr.mxu0 0.0
      %465 = vmatpush1.msra.mxu0 0.0
      %466 = vmatprep.subr.mxu0 0.0
      %467 = vmatpush1.msra.mxu0 0.0
      %468 = vmatprep.subr.mxu0 0.0
      %469 = vmatpush1.msra.mxu0 0.0
      %470 = vmatprep.subr.mxu0 0.0
      %471 = vmatpush1.msra.mxu0 0.0
      %472 = vmatprep.subr.mxu0 0.0
      %473 = vmatpush1.msra.mxu0 0.0
      %474 = vmatprep.subr.mxu0 0.0
      %475 = vmatpush1.msra.mxu0 0.0
      %476 = vmatprep.subr.mxu0 0.0
      %477 = vmatpush1.msra.mxu0 0.0
      %478 = vmatprep.subr.mxu0 0.0
      %479 = vmatpush1.msra.mxu0 0.0
      %480 = vmatprep.subr.mxu0 0.0
      %481 = vmatpush1.msra.mxu0 0.0
      %482 = vmatprep.subr.mxu0 0.0
      %483 = vmatpush1.msra.mxu0 0.0
      %484 = vmatprep.subr.mxu0 0.0
      %485 = vmatpush1.msra.mxu0 0.0
      %486 = vmatprep.subr.mxu0 0.0
      %487 = vmatpush1.msra.mxu0 0.0
      %488 = vmatprep.subr.mxu0 0.0
      %489 = vmatpush1.msra.mxu0 0.0
      %490 = vmatprep.subr.mxu0 0.0
      %491 = vmatpush1.msra.mxu0 0.0
      %492 = vmatprep.subr.mxu0 0.0
      %493 = vmatpush1.msra.mxu0 0.0
      %494 = vmatprep.subr.mxu0 0.0
      %495 = vmatpush1.msra.mxu0 0.0
      %496 = vmatprep.subr.mxu0 0.0
      %497 = vmatpush1.msra.mxu0 0.0
      %498 = vmatprep.subr.mxu0 0.0
      %499 = vmatpush1.msra.mxu0 0.0
      %500 = vmatprep.subr.mxu0 0.0
      %501 = vmatpush1.msra.mxu0 0.0
      %502 = vmatprep.subr.mxu0 0.0
      %503 = vmatpush1.msra.mxu0 0.0
      %504 = vmatprep.subr.mxu0 0.0
      %505 = vmatpush1.msra.mxu0 0.0
      %506 = vmatprep.subr.mxu0 0.0
      %507 = vmatpush1.msra.mxu0 0.0
      %508 = vmatprep.subr.mxu0 0.0
      %509 = vmatpush1.msra.mxu0 0.0
      %510 = vmatprep.subr.mxu0 0.0
      %511 = vmatpush1.msra.mxu0 0.0
      %512 = vmatprep.subr.mxu0 0.0
      %513 = vmatpush1.msra.mxu0 0.0
      %514 = vmatprep.subr.mxu0 0.0
      %515 = vmatpush1.msra.mxu0 0.0
      %516 = vmatprep.subr.mxu0 0.0
      %517 = vmatpush1.msra.mxu0 0.0
      %518 = vmatprep.mubr.f32.mxu0 0.0
      %519 = vmatmul.mubr.f32.gmra.mrb[0].mxu0 %v289
      %v520 = vpop.f32.mrb[0].mxu0
      %v521 = vadd.f32 %v285, %v520
      %v522 = vpop.f32.mrb[0].mxu0
      %523 = vmatprep.mubr.f32.mxu0 0.0
      %524 = vmatmul.mubr.f32.gmra.mrb[0].mxu0 %v292
      %v525 = vpop.f32.mrb[0].mxu0
      %v526 = vadd.f32 %v285, %v525
      %v527 = vpop.f32.mrb[0].mxu0
      %528 = vmatprep.mubr.f32.mxu0 0.0
      %529 = vmatmul.mubr.f32.gmra.mrb[0].mxu0 %v295
      %v530 = vpop.f32.mrb[0].mxu0
      %v531 = vadd.f32 %v285, %v530
      %v532 = vpop.f32.mrb[0].mxu0
      %533 = vmatprep.mubr.f32.mxu0 0.0
      %534 = vmatmul.mubr.f32.gmra.mrb[0].mxu0 %v298
      %v535 = vpop.f32.mrb[0].mxu0
      %v536 = vadd.f32 %v285, %v535
      %v537 = vpop.f32.mrb[0].mxu0
      %538 = vmatprep.mubr.f32.mxu0 0.0
      %539 = vmatmul.mubr.f32.gmra.mrb[0].mxu0 %v301
      %v540 = vpop.f32.mrb[0].mxu0
      %v541 = vadd.f32 %v285, %v540
      %v542 = vpop.f32.mrb[0].mxu0
      %543 = vmatprep.mubr.f32.mxu0 0.0
      %544 = vmatmul.mubr.f32.gmra.mrb[0].mxu0 %v304
      %v545 = vpop.f32.mrb[0].mxu0
      %v546 = vadd.f32 %v285, %v545
      %v547 = vpop.f32.mrb[0].mxu0
      %548 = vmatprep.mubr.f32.mxu0 0.0
      %549 = vmatmul.mubr.f32.gmra.mrb[0].mxu0 %v307
      %v550 = vpop.f32.mrb[0].mxu0
      %v551 = vadd.f32 %v285, %v550
      %v552 = vpop.f32.mrb[0].mxu0
      %553 = vmatprep.mubr.f32.mxu0 0.0
      %554 = vmatmul.mubr.f32.gmra.mrb[0].mxu0 %v310
      %v555 = vpop.f32.mrb[0].mxu0
      %v556 = vadd.f32 %v285, %v555
      %v557 = vpop.f32.mrb[0].mxu0
      %558 = vmatprep.mubr.f32.mxu0 0.0
      %559 = vmatmul.mubr.f32.gmra.mrb[0].mxu0 %v313
      %v560 = vpop.f32.mrb[0].mxu0
      %v561 = vadd.f32 %v285, %v560
      %v562 = vpop.f32.mrb[0].mxu0
      %563 = vmatprep.mubr.f32.mxu0 0.0
      %564 = vmatmul.mubr.f32.gmra.mrb[0].mxu0 %v316
      %v565 = vpop.f32.mrb[0].mxu0
      %v566 = vadd.f32 %v285, %v565
      %v567 = vpop.f32.mrb[0].mxu0
      %568 = vmatprep.mubr.f32.mxu0 0.0
      %569 = vmatmul.mubr.f32.gmra.mrb[0].mxu0 %v319
      %v570 = vpop.f32.mrb[0].mxu0
      %v571 = vadd.f32 %v285, %v570
      %v572 = vpop.f32.mrb[0].mxu0
      %573 = vmatprep.mubr.f32.mxu0 0.0
      %574 = vmatmul.mubr.f32.gmra.mrb[0].mxu0 %v322
      %v575 = vpop.f32.mrb[0].mxu0
      %v576 = vadd.f32 %v285, %v575
      %v577 = vpop.f32.mrb[0].mxu0
      %578 = vmatprep.mubr.f32.mxu0 0.0
      %579 = vmatmul.mubr.f32.gmra.mrb[0].mxu0 %v325
      %v580 = vpop.f32.mrb[0].mxu0
      %v581 = vadd.f32 %v285, %v580
      %v582 = vpop.f32.mrb[0].mxu0
      %583 = vmatprep.mubr.f32.mxu0 0.0
      %584 = vmatmul.mubr.f32.gmra.mrb[0].mxu0 %v328
      %v585 = vpop.f32.mrb[0].mxu0
      %v586 = vadd.f32 %v285, %v585
      %v587 = vpop.f32.mrb[0].mxu0
      %588 = vmatprep.mubr.f32.mxu0 0.0
      %589 = vmatmul.mubr.f32.gmra.mrb[0].mxu0 %v331
      %v590 = vpop.f32.mrb[0].mxu0
      %v591 = vadd.f32 %v285, %v590
      %v592 = vpop.f32.mrb[0].mxu0
      %593 = vmatprep.mubr.f32.mxu0 0.0
      %594 = vmatmul.mubr.f32.gmra.mrb[0].mxu0 %v334
      %v595 = vpop.f32.mrb[0].mxu0
      %v596 = vadd.f32 %v285, %v595
      %v597 = vpop.f32.mrb[0].mxu0
      %598 = vmatprep.mubr.f32.mxu0 0.0
      %599 = vmatmul.mubr.f32.gmra.mrb[0].mxu0 %v337
      %v600 = vpop.f32.mrb[0].mxu0
      %v601 = vadd.f32 %v285, %v600
      %v602 = vpop.f32.mrb[0].mxu0
      %603 = vmatprep.mubr.f32.mxu0 0.0
      %604 = vmatmul.mubr.f32.gmra.mrb[0].mxu0 %v340
      %v605 = vpop.f32.mrb[0].mxu0
      %v606 = vadd.f32 %v285, %v605
      %v607 = vpop.f32.mrb[0].mxu0
      %608 = vmatprep.mubr.f32.mxu0 0.0
      %609 = vmatmul.mubr.f32.gmra.mrb[0].mxu0 %v343
      %v610 = vpop.f32.mrb[0].mxu0
      %v611 = vadd.f32 %v285, %v610
      %v612 = vpop.f32.mrb[0].mxu0
      %613 = vmatprep.mubr.f32.mxu0 0.0
      %614 = vmatmul.mubr.f32.gmra.mrb[0].mxu0 %v346
      %v615 = vpop.f32.mrb[0].mxu0
      %v616 = vadd.f32 %v285, %v615
      %v617 = vpop.f32.mrb[0].mxu0
      %618 = vmatprep.mubr.f32.mxu0 0.0
      %619 = vmatmul.mubr.f32.gmra.mrb[0].mxu0 %v349
      %v620 = vpop.f32.mrb[0].mxu0
      %v621 = vadd.f32 %v285, %v620
      %v622 = vpop.f32.mrb[0].mxu0
      %623 = vmatprep.mubr.f32.mxu0 0.0
      %624 = vmatmul.mubr.f32.gmra.mrb[0].mxu0 %v352
      %v625 = vpop.f32.mrb[0].mxu0
      %v626 = vadd.f32 %v285, %v625
      %v627 = vpop.f32.mrb[0].mxu0
      %628 = vmatprep.mubr.f32.mxu0 0.0
      %629 = vmatmul.mubr.f32.gmra.mrb[0].mxu0 %v355
      %v630 = vpop.f32.mrb[0].mxu0
      %v631 = vadd.f32 %v285, %v630
      %v632 = vpop.f32.mrb[0].mxu0
      %633 = vmatprep.mubr.f32.mxu0 0.0
      %634 = vmatmul.mubr.f32.gmra.mrb[0].mxu0 %v358
      %v635 = vpop.f32.mrb[0].mxu0
      %v636 = vadd.f32 %v285, %v635
      %v637 = vpop.f32.mrb[0].mxu0
      %638 = vmatprep.mubr.f32.mxu0 0.0
      %639 = vmatmul.mubr.f32.gmra.mrb[0].mxu0 %v361
      %v640 = vpop.f32.mrb[0].mxu0
      %v641 = vadd.f32 %v285, %v640
      %v642 = vpop.f32.mrb[0].mxu0
      %643 = vmatprep.mubr.f32.mxu0 0.0
      %644 = vmatmul.mubr.f32.gmra.mrb[0].mxu0 %v364
      %v645 = vpop.f32.mrb[0].mxu0
      %v646 = vadd.f32 %v285, %v645
      %v647 = vpop.f32.mrb[0].mxu0
      %648 = vmatprep.mubr.f32.mxu0 0.0
      %649 = vmatmul.mubr.f32.gmra.mrb[0].mxu0 %v367
      %v650 = vpop.f32.mrb[0].mxu0
      %v651 = vadd.f32 %v285, %v650
      %v652 = vpop.f32.mrb[0].mxu0
      %653 = vmatprep.mubr.f32.mxu0 0.0
      %654 = vmatmul.mubr.f32.gmra.mrb[0].mxu0 %v370
      %v655 = vpop.f32.mrb[0].mxu0
      %v656 = vadd.f32 %v285, %v655
      %v657 = vpop.f32.mrb[0].mxu0
      %658 = vmatprep.mubr.f32.mxu0 0.0
      %659 = vmatmul.mubr.f32.gmra.mrb[0].mxu0 %v373
      %v660 = vpop.f32.mrb[0].mxu0
      %v661 = vadd.f32 %v285, %v660
      %v662 = vpop.f32.mrb[0].mxu0
      %663 = vmatprep.mubr.f32.mxu0 0.0
      %664 = vmatmul.mubr.f32.gmra.mrb[0].mxu0 %v376
      %v665 = vpop.f32.mrb[0].mxu0
      %v666 = vadd.f32 %v285, %v665
      %v667 = vpop.f32.mrb[0].mxu0
      %668 = vmatprep.mubr.f32.mxu0 0.0
      %669 = vmatmul.mubr.f32.gmra.mrb[0].mxu0 %v379
      %v670 = vpop.f32.mrb[0].mxu0
      %v671 = vadd.f32 %v285, %v670
      %v672 = vpop.f32.mrb[0].mxu0
      %673 = vmatprep.mubr.f32.mxu0 0.0
      %674 = vmatmul.mubr.f32.gmra.mrb[0].mxu0 %v382
      %v675 = vpop.f32.mrb[0].mxu0
      %v676 = vadd.f32 %v285, %v675
      %v677 = vpop.f32.mrb[0].mxu0
      %678 = vmatprep.mubr.f32.mxu0 0.0
      %679 = vmatmul.mubr.f32.gmra.mrb[0].mxu0 %v385
      %v680 = vpop.f32.mrb[0].mxu0
      %v681 = vadd.f32 %v285, %v680
      %v682 = vpop.f32.mrb[0].mxu0
      %683 = vmatprep.mubr.f32.mxu0 0.0
      %684 = vmatmul.mubr.f32.gmra.mrb[0].mxu0 %v388
      %v685 = vpop.f32.mrb[0].mxu0
      %v686 = vadd.f32 %v285, %v685
      %v687 = vpop.f32.mrb[0].mxu0
      %688 = vmatprep.mubr.f32.mxu0 0.0
      %689 = vmatmul.mubr.f32.gmra.mrb[0].mxu0 %v391
      %v690 = vpop.f32.mrb[0].mxu0
      %v691 = vadd.f32 %v285, %v690
      %v692 = vpop.f32.mrb[0].mxu0
      %693 = vmatprep.mubr.f32.mxu0 0.0
      %694 = vmatmul.mubr.f32.gmra.mrb[0].mxu0 %v394
      %v695 = vpop.f32.mrb[0].mxu0
      %v696 = vadd.f32 %v285, %v695
      %v697 = vpop.f32.mrb[0].mxu0
      %698 = vmatprep.mubr.f32.mxu0 0.0
      %699 = vmatmul.mubr.f32.gmra.mrb[0].mxu0 %v397
      %v700 = vpop.f32.mrb[0].mxu0
      %v701 = vadd.f32 %v285, %v700
      %v702 = vpop.f32.mrb[0].mxu0
      %703 = vmatprep.mubr.f32.mxu0 0.0
      %704 = vmatmul.mubr.f32.gmra.mrb[0].mxu0 %v400
      %v705 = vpop.f32.mrb[0].mxu0
      %v706 = vadd.f32 %v285, %v705
      %v707 = vpop.f32.mrb[0].mxu0
      %708 = vmatprep.mubr.f32.mxu0 0.0
      %709 = vmatmul.mubr.f32.gmra.mrb[0].mxu0 %v403
      %v710 = vpop.f32.mrb[0].mxu0
      %v711 = vadd.f32 %v285, %v710
      %v712 = vpop.f32.mrb[0].mxu0
      %713 = vmatprep.mubr.f32.mxu0 0.0
      %714 = vmatmul.mubr.f32.gmra.mrb[0].mxu0 %v406
      %v715 = vpop.f32.mrb[0].mxu0
      %v716 = vadd.f32 %v285, %v715
      %v717 = vpop.f32.mrb[0].mxu0
      %718 = vmatprep.mubr.f32.mxu0 0.0
      %719 = vmatmul.mubr.f32.gmra.mrb[0].mxu0 %v409
      %v720 = vpop.f32.mrb[0].mxu0
      %v721 = vadd.f32 %v285, %v720
      %v722 = vpop.f32.mrb[0].mxu0
      %723 = vmatprep.mubr.f32.mxu0 0.0
      %724 = vmatmul.mubr.f32.gmra.mrb[0].mxu0 %v412
      %v725 = vpop.f32.mrb[0].mxu0
      %v726 = vadd.f32 %v285, %v725
      %v727 = vpop.f32.mrb[0].mxu0
      %728 = vmatprep.mubr.f32.mxu0 0.0
      %729 = vmatmul.mubr.f32.gmra.mrb[0].mxu0 %v415
      %v730 = vpop.f32.mrb[0].mxu0
      %v731 = vadd.f32 %v285, %v730
      %v732 = vpop.f32.mrb[0].mxu0
      %733 = vmatprep.mubr.f32.mxu0 0.0
      %734 = vmatmul.mubr.f32.gmra.mrb[0].mxu0 %v418
      %v735 = vpop.f32.mrb[0].mxu0
      %v736 = vadd.f32 %v285, %v735
      %v737 = vpop.f32.mrb[0].mxu0
      %738 = vmatprep.mubr.f32.mxu0 0.0
      %739 = vmatmul.mubr.f32.gmra.mrb[0].mxu0 %v421
      %v740 = vpop.f32.mrb[0].mxu0
      %v741 = vadd.f32 %v285, %v740
      %v742 = vpop.f32.mrb[0].mxu0
      %743 = vmatprep.mubr.f32.mxu0 0.0
      %744 = vmatmul.mubr.f32.gmra.mrb[0].mxu0 %v424
      %v745 = vpop.f32.mrb[0].mxu0
      %v746 = vadd.f32 %v285, %v745
      %v747 = vpop.f32.mrb[0].mxu0
      %748 = vmatprep.mubr.f32.mxu0 0.0
      %749 = vmatmul.mubr.f32.gmra.mrb[0].mxu0 %v427
      %v750 = vpop.f32.mrb[0].mxu0
      %v751 = vadd.f32 %v285, %v750
      %v752 = vpop.f32.mrb[0].mxu0
      %753 = vmatprep.mubr.f32.mxu0 0.0
      %754 = vmatmul.mubr.f32.gmra.mrb[0].mxu0 %v430
      %v755 = vpop.f32.mrb[0].mxu0
      %v756 = vadd.f32 %v285, %v755
      %v757 = vpop.f32.mrb[0].mxu0
      %758 = vmatprep.mubr.f32.mxu0 0.0
      %759 = vmatmul.mubr.f32.gmra.mrb[0].mxu0 %v433
      %v760 = vpop.f32.mrb[0].mxu0
      %v761 = vadd.f32 %v285, %v760
      %v762 = vpop.f32.mrb[0].mxu0
      %763 = vmatprep.mubr.f32.mxu0 0.0
      %764 = vmatmul.mubr.f32.gmra.mrb[0].mxu0 %v436
      %v765 = vpop.f32.mrb[0].mxu0
      %v766 = vadd.f32 %v285, %v765
      %v767 = vpop.f32.mrb[0].mxu0
      %768 = vmatprep.mubr.f32.mxu0 0.0
      %769 = vmatmul.mubr.f32.gmra.mrb[0].mxu0 %v439
      %v770 = vpop.f32.mrb[0].mxu0
      %v771 = vadd.f32 %v285, %v770
      %v772 = vpop.f32.mrb[0].mxu0
      %773 = vmatprep.mubr.f32.mxu0 0.0
      %774 = vmatmul.mubr.f32.gmra.mrb[0].mxu0 %v442
      %v775 = vpop.f32.mrb[0].mxu0
      %v776 = vadd.f32 %v285, %v775
      %v777 = vpop.f32.mrb[0].mxu0
      %778 = vmatprep.mubr.f32.mxu0 0.0
      %779 = vmatmul.mubr.f32.gmra.mrb[0].mxu0 %v445
      %v780 = vpop.f32.mrb[0].mxu0
      %v781 = vadd.f32 %v285, %v780
      %v782 = vpop.f32.mrb[0].mxu0
      %783 = vmatprep.mubr.f32.mxu0 0.0
      %784 = vmatmul.mubr.f32.gmra.mrb[0].mxu0 %v448
      %v785 = vpop.f32.mrb[0].mxu0
      %v786 = vadd.f32 %v285, %v785
      %v787 = vpop.f32.mrb[0].mxu0
      %788 = vdwg.mxu0
      %v789 = vmax.f32 %v521, 0.0
      %v790 = vmax.f32 %v526, 0.0
      %v791 = vmax.f32 %v531, 0.0
      %v792 = vmax.f32 %v536, 0.0
      %v793 = vmax.f32 %v541, 0.0
      %v794 = vmax.f32 %v546, 0.0
      %v795 = vmax.f32 %v551, 0.0
      %v796 = vmax.f32 %v556, 0.0
      %v797 = vmax.f32 %v561, 0.0
      %v798 = vmax.f32 %v566, 0.0
      %v799 = vmax.f32 %v571, 0.0
      %v800 = vmax.f32 %v576, 0.0
      %v801 = vmax.f32 %v581, 0.0
      %v802 = vmax.f32 %v586, 0.0
      %v803 = vmax.f32 %v591, 0.0
      %v804 = vmax.f32 %v596, 0.0
      %v805 = vmax.f32 %v601, 0.0
      %v806 = vmax.f32 %v606, 0.0
      %v807 = vmax.f32 %v611, 0.0
      %v808 = vmax.f32 %v616, 0.0
      %v809 = vmax.f32 %v621, 0.0
      %v810 = vmax.f32 %v626, 0.0
      %v811 = vmax.f32 %v631, 0.0
      %v812 = vmax.f32 %v636, 0.0
      %v813 = vmax.f32 %v641, 0.0
      %v814 = vmax.f32 %v646, 0.0
      %v815 = vmax.f32 %v651, 0.0
      %v816 = vmax.f32 %v656, 0.0
      %v817 = vmax.f32 %v661, 0.0
      %v818 = vmax.f32 %v666, 0.0
      %v819 = vmax.f32 %v671, 0.0
      %v820 = vmax.f32 %v676, 0.0
      %v821 = vmax.f32 %v681, 0.0
      %v822 = vmax.f32 %v686, 0.0
      %v823 = vmax.f32 %v691, 0.0
      %v824 = vmax.f32 %v696, 0.0
      %v825 = vmax.f32 %v701, 0.0
      %v826 = vmax.f32 %v706, 0.0
      %v827 = vmax.f32 %v711, 0.0
      %v828 = vmax.f32 %v716, 0.0
      %v829 = vmax.f32 %v721, 0.0
      %v830 = vmax.f32 %v726, 0.0
      %v831 = vmax.f32 %v731, 0.0
      %v832 = vmax.f32 %v736, 0.0
      %v833 = vmax.f32 %v741, 0.0
      %v834 = vmax.f32 %v746, 0.0
      %v835 = vmax.f32 %v751, 0.0
      %v836 = vmax.f32 %v756, 0.0
      %v837 = vmax.f32 %v761, 0.0
      %v838 = vmax.f32 %v766, 0.0
      %v839 = vmax.f32 %v771, 0.0
      %v840 = vmax.f32 %v776, 0.0
      %v841 = vmax.f32 %v781, 0.0
      %v842 = vmax.f32 %v786, 0.0
      %v843 = vlaneseq
      %v844 = vshrl.u32 %v843, 7
      %v845 = vadd.s32 %v844, 8
      %v846 = vadd.s32 %v844, 16
      %vm847 = vcmp.ge.s32.totalorder %v844, 1
      %vm848 = vcmp.ge.s32.totalorder %v845, 1
      %vm849 = vcmp.ge.s32.totalorder %v846, 1
      %vm850 = vmand 0, %vm847
      %vm851 = vmand 0, %vm848
      %vm852 = vmand 0, %vm849
      %vm853 = vmand 1, %vm847
      %vm854 = vmand 1, %vm848
      %vm855 = vmand 1, %vm849
      %vm856 = vcmp.le.s32.totalorder %v844, 16
      %vm857 = vcmp.le.s32.totalorder %v845, 16
      %vm858 = vcmp.le.s32.totalorder %v846, 16
      %vm859 = vmand %vm850, %vm856
      %vm860 = vmand %vm851, %vm857
      %vm861 = vmand %vm852, %vm858
      %vm862 = vmand %vm853, %vm856
      %vm863 = vmand %vm854, %vm857
      %vm864 = vmand %vm855, %vm858
      %v865 = vsel %vm859, %v789, 0.0
      %v866 = vsel %vm860, %v790, 0.0
      %v867 = vsel %vm861, %v791, 0.0
      %v868 = vsel %vm862, %v792, 0.0
      %v869 = vsel %vm863, %v793, 0.0
      %v870 = vsel %vm864, %v794, 0.0
      %v871 = vsel %vm862, %v795, 0.0
      %v872 = vsel %vm863, %v796, 0.0
      %v873 = vsel %vm864, %v797, 0.0
      %v874 = vsel %vm862, %v798, 0.0
      %v875 = vsel %vm863, %v799, 0.0
      %v876 = vsel %vm864, %v800, 0.0
      %v877 = vsel %vm862, %v801, 0.0
      %v878 = vsel %vm863, %v802, 0.0
      %v879 = vsel %vm864, %v803, 0.0
      %v880 = vsel %vm862, %v804, 0.0
      %v881 = vsel %vm863, %v805, 0.0
      %v882 = vsel %vm864, %v806, 0.0
      %v883 = vsel %vm862, %v807, 0.0
      %v884 = vsel %vm863, %v808, 0.0
      %v885 = vsel %vm864, %v809, 0.0
      %v886 = vsel %vm862, %v810, 0.0
      %v887 = vsel %vm863, %v811, 0.0
      %v888 = vsel %vm864, %v812, 0.0
      %v889 = vsel %vm862, %v813, 0.0
      %v890 = vsel %vm863, %v814, 0.0
      %v891 = vsel %vm864, %v815, 0.0
      %v892 = vsel %vm862, %v816, 0.0
      %v893 = vsel %vm863, %v817, 0.0
      %v894 = vsel %vm864, %v818, 0.0
      %v895 = vsel %vm862, %v819, 0.0
      %v896 = vsel %vm863, %v820, 0.0
      %v897 = vsel %vm864, %v821, 0.0
      %v898 = vsel %vm862, %v822, 0.0
      %v899 = vsel %vm863, %v823, 0.0
      %v900 = vsel %vm864, %v824, 0.0
      %v901 = vsel %vm862, %v825, 0.0
      %v902 = vsel %vm863, %v826, 0.0
      %v903 = vsel %vm864, %v827, 0.0
      %v904 = vsel %vm862, %v828, 0.0
      %v905 = vsel %vm863, %v829, 0.0
      %v906 = vsel %vm864, %v830, 0.0
      %v907 = vsel %vm862, %v831, 0.0
      %v908 = vsel %vm863, %v832, 0.0
      %v909 = vsel %vm864, %v833, 0.0
      %v910 = vsel %vm862, %v834, 0.0
      %v911 = vsel %vm863, %v835, 0.0
      %v912 = vsel %vm864, %v836, 0.0
      %v913 = vsel %vm862, %v837, 0.0
      %v914 = vsel %vm863, %v838, 0.0
      %v915 = vsel %vm864, %v839, 0.0
      %v916 = vsel %vm859, %v840, 0.0
      %v917 = vsel %vm860, %v841, 0.0
      %v918 = vsel %vm861, %v842, 0.0
      %vm967 = vcmask 1046528
      %v968 = vrot.slane %v865, 1
      %v969 = vrot.slane %v866, 1
      %v970 = vsel %vm967, %v968, %v969
      %v971 = vrot.slane %v867, 1
      %v972 = vsel %vm967, %v969, %v971
      %v973 = vrot.slane %v868, 1
      %v974 = vrot.slane %v869, 1
      %v975 = vsel %vm967, %v973, %v974
      %v976 = vrot.slane %v870, 1
      %v977 = vsel %vm967, %v974, %v976
      %v978 = vrot.slane %v871, 1
      %v979 = vrot.slane %v872, 1
      %v980 = vsel %vm967, %v978, %v979
      %v981 = vrot.slane %v873, 1
      %v982 = vsel %vm967, %v979, %v981
      %v983 = vrot.slane %v874, 1
      %v984 = vrot.slane %v875, 1
      %v985 = vsel %vm967, %v983, %v984
      %v986 = vrot.slane %v876, 1
      %v987 = vsel %vm967, %v984, %v986
      %v988 = vrot.slane %v877, 1
      %v989 = vrot.slane %v878, 1
      %v990 = vsel %vm967, %v988, %v989
      %v991 = vrot.slane %v879, 1
      %v992 = vsel %vm967, %v989, %v991
      %v993 = vrot.slane %v880, 1
      %v994 = vrot.slane %v881, 1
      %v995 = vsel %vm967, %v993, %v994
      %v996 = vrot.slane %v882, 1
      %v997 = vsel %vm967, %v994, %v996
      %v998 = vrot.slane %v883, 1
      %v999 = vrot.slane %v884, 1
      %v1000 = vsel %vm967, %v998, %v999
      %v1001 = vrot.slane %v885, 1
      %v1002 = vsel %vm967, %v999, %v1001
      %v1003 = vrot.slane %v886, 1
      %v1004 = vrot.slane %v887, 1
      %v1005 = vsel %vm967, %v1003, %v1004
      %v1006 = vrot.slane %v888, 1
      %v1007 = vsel %vm967, %v1004, %v1006
      %v1008 = vrot.slane %v889, 1
      %v1009 = vrot.slane %v890, 1
      %v1010 = vsel %vm967, %v1008, %v1009
      %v1011 = vrot.slane %v891, 1
      %v1012 = vsel %vm967, %v1009, %v1011
      %v1013 = vrot.slane %v892, 1
      %v1014 = vrot.slane %v893, 1
      %v1015 = vsel %vm967, %v1013, %v1014
      %v1016 = vrot.slane %v894, 1
      %v1017 = vsel %vm967, %v1014, %v1016
      %v1018 = vrot.slane %v895, 1
      %v1019 = vrot.slane %v896, 1
      %v1020 = vsel %vm967, %v1018, %v1019
      %v1021 = vrot.slane %v897, 1
      %v1022 = vsel %vm967, %v1019, %v1021
      %v1023 = vrot.slane %v898, 1
      %v1024 = vrot.slane %v899, 1
      %v1025 = vsel %vm967, %v1023, %v1024
      %v1026 = vrot.slane %v900, 1
      %v1027 = vsel %vm967, %v1024, %v1026
      %v1028 = vrot.slane %v901, 1
      %v1029 = vrot.slane %v902, 1
      %v1030 = vsel %vm967, %v1028, %v1029
      %v1031 = vrot.slane %v903, 1
      %v1032 = vsel %vm967, %v1029, %v1031
      %v1033 = vrot.slane %v904, 1
      %v1034 = vrot.slane %v905, 1
      %v1035 = vsel %vm967, %v1033, %v1034
      %v1036 = vrot.slane %v906, 1
      %v1037 = vsel %vm967, %v1034, %v1036
      %v1038 = vrot.slane %v907, 1
      %v1039 = vrot.slane %v908, 1
      %v1040 = vsel %vm967, %v1038, %v1039
      %v1041 = vrot.slane %v909, 1
      %v1042 = vsel %vm967, %v1039, %v1041
      %v1043 = vrot.slane %v910, 1
      %v1044 = vrot.slane %v911, 1
      %v1045 = vsel %vm967, %v1043, %v1044
      %v1046 = vrot.slane %v912, 1
      %v1047 = vsel %vm967, %v1044, %v1046
      %1048 = vrot.lane.b32.xlu0 %v970, 4
      %v1049 = vpop.permute.xlu0 %1048
      %1050 = vrot.lane.b32.xlu0 %v972, 4
      %v1051 = vpop.permute.xlu0 %1050
      %1052 = vrot.lane.b32.xlu0 %v975, 4
      %v1053 = vpop.permute.xlu0 %1052
      %1054 = vrot.lane.b32.xlu0 %v977, 4
      %v1055 = vpop.permute.xlu0 %1054
      %1056 = vrot.lane.b32.xlu0 %v980, 4
      %v1057 = vpop.permute.xlu0 %1056
      %1058 = vrot.lane.b32.xlu0 %v982, 4
      %v1059 = vpop.permute.xlu0 %1058
      %1060 = vrot.lane.b32.xlu0 %v985, 4
      %v1061 = vpop.permute.xlu0 %1060
      %1062 = vrot.lane.b32.xlu0 %v987, 4
      %v1063 = vpop.permute.xlu0 %1062
      %1064 = vrot.lane.b32.xlu0 %v990, 4
      %v1065 = vpop.permute.xlu0 %1064
      %1066 = vrot.lane.b32.xlu0 %v992, 4
      %v1067 = vpop.permute.xlu0 %1066
      %1068 = vrot.lane.b32.xlu0 %v995, 4
      %v1069 = vpop.permute.xlu0 %1068
      %1070 = vrot.lane.b32.xlu0 %v997, 4
      %v1071 = vpop.permute.xlu0 %1070
      %1072 = vrot.lane.b32.xlu0 %v1000, 4
      %v1073 = vpop.permute.xlu0 %1072
      %1074 = vrot.lane.b32.xlu0 %v1002, 4
      %v1075 = vpop.permute.xlu0 %1074
      %1076 = vrot.lane.b32.xlu0 %v1005, 4
      %v1077 = vpop.permute.xlu0 %1076
      %1078 = vrot.lane.b32.xlu0 %v1007, 4
      %v1079 = vpop.permute.xlu0 %1078
      %1080 = vrot.lane.b32.xlu0 %v1010, 4
      %v1081 = vpop.permute.xlu0 %1080
      %1082 = vrot.lane.b32.xlu0 %v1012, 4
      %v1083 = vpop.permute.xlu0 %1082
      %1084 = vrot.lane.b32.xlu0 %v1015, 4
      %v1085 = vpop.permute.xlu0 %1084
      %1086 = vrot.lane.b32.xlu0 %v1017, 4
      %v1087 = vpop.permute.xlu0 %1086
      %1088 = vrot.lane.b32.xlu0 %v1020, 4
      %v1089 = vpop.permute.xlu0 %1088
      %1090 = vrot.lane.b32.xlu0 %v1022, 4
      %v1091 = vpop.permute.xlu0 %1090
      %1092 = vrot.lane.b32.xlu0 %v1025, 4
      %v1093 = vpop.permute.xlu0 %1092
      %1094 = vrot.lane.b32.xlu0 %v1027, 4
      %v1095 = vpop.permute.xlu0 %1094
      %1096 = vrot.lane.b32.xlu0 %v1030, 4
      %v1097 = vpop.permute.xlu0 %1096
      %1098 = vrot.lane.b32.xlu0 %v1032, 4
      %v1099 = vpop.permute.xlu0 %1098
      %1100 = vrot.lane.b32.xlu0 %v1035, 4
      %v1101 = vpop.permute.xlu0 %1100
      %1102 = vrot.lane.b32.xlu0 %v1037, 4
      %v1103 = vpop.permute.xlu0 %1102
      %1104 = vrot.lane.b32.xlu0 %v1040, 4
      %v1105 = vpop.permute.xlu0 %1104
      %1106 = vrot.lane.b32.xlu0 %v1042, 4
      %v1107 = vpop.permute.xlu0 %1106
      %1108 = vrot.lane.b32.xlu0 %v1045, 4
      %v1109 = vpop.permute.xlu0 %1108
      %1110 = vrot.lane.b32.xlu0 %v1047, 4
      %v1111 = vpop.permute.xlu0 %1110
      %vm1144 = vcmask 1045504
      %v1145 = vrot.slane %v865, 2
      %v1146 = vrot.slane %v866, 2
      %v1147 = vsel %vm1144, %v1145, %v1146
      %v1148 = vrot.slane %v867, 2
      %v1149 = vsel %vm1144, %v1146, %v1148
      %v1150 = vrot.slane %v868, 2
      %v1151 = vrot.slane %v869, 2
      %v1152 = vsel %vm1144, %v1150, %v1151
      %v1153 = vrot.slane %v870, 2
      %v1154 = vsel %vm1144, %v1151, %v1153
      %v1155 = vrot.slane %v871, 2
      %v1156 = vrot.slane %v872, 2
      %v1157 = vsel %vm1144, %v1155, %v1156
      %v1158 = vrot.slane %v873, 2
      %v1159 = vsel %vm1144, %v1156, %v1158
      %v1160 = vrot.slane %v874, 2
      %v1161 = vrot.slane %v875, 2
      %v1162 = vsel %vm1144, %v1160, %v1161
      %v1163 = vrot.slane %v876, 2
      %v1164 = vsel %vm1144, %v1161, %v1163
      %v1165 = vrot.slane %v877, 2
      %v1166 = vrot.slane %v878, 2
      %v1167 = vsel %vm1144, %v1165, %v1166
      %v1168 = vrot.slane %v879, 2
      %v1169 = vsel %vm1144, %v1166, %v1168
      %v1170 = vrot.slane %v880, 2
      %v1171 = vrot.slane %v881, 2
      %v1172 = vsel %vm1144, %v1170, %v1171
      %v1173 = vrot.slane %v882, 2
      %v1174 = vsel %vm1144, %v1171, %v1173
      %v1175 = vrot.slane %v883, 2
      %v1176 = vrot.slane %v884, 2
      %v1177 = vsel %vm1144, %v1175, %v1176
      %v1178 = vrot.slane %v885, 2
      %v1179 = vsel %vm1144, %v1176, %v1178
      %v1180 = vrot.slane %v886, 2
      %v1181 = vrot.slane %v887, 2
      %v1182 = vsel %vm1144, %v1180, %v1181
      %v1183 = vrot.slane %v888, 2
      %v1184 = vsel %vm1144, %v1181, %v1183
      %v1185 = vrot.slane %v889, 2
      %v1186 = vrot.slane %v890, 2
      %v1187 = vsel %vm1144, %v1185, %v1186
      %v1188 = vrot.slane %v891, 2
      %v1189 = vsel %vm1144, %v1186, %v1188
      %v1190 = vrot.slane %v892, 2
      %v1191 = vrot.slane %v893, 2
      %v1192 = vsel %vm1144, %v1190, %v1191
      %v1193 = vrot.slane %v894, 2
      %v1194 = vsel %vm1144, %v1191, %v1193
      %v1195 = vrot.slane %v895, 2
      %v1196 = vrot.slane %v896, 2
      %v1197 = vsel %vm1144, %v1195, %v1196
      %v1198 = vrot.slane %v897, 2
      %v1199 = vsel %vm1144, %v1196, %v1198
      %v1200 = vrot.slane %v898, 2
      %v1201 = vrot.slane %v899, 2
      %v1202 = vsel %vm1144, %v1200, %v1201
      %v1203 = vrot.slane %v900, 2
      %v1204 = vsel %vm1144, %v1201, %v1203
      %v1205 = vrot.slane %v901, 2
      %v1206 = vrot.slane %v902, 2
      %v1207 = vsel %vm1144, %v1205, %v1206
      %v1208 = vrot.slane %v903, 2
      %v1209 = vsel %vm1144, %v1206, %v1208
      %v1210 = vrot.slane %v904, 2
      %v1211 = vrot.slane %v905, 2
      %v1212 = vsel %vm1144, %v1210, %v1211
      %v1213 = vrot.slane %v906, 2
      %v1214 = vsel %vm1144, %v1211, %v1213
      %v1215 = vrot.slane %v907, 2
      %v1216 = vrot.slane %v908, 2
      %v1217 = vsel %vm1144, %v1215, %v1216
      %v1218 = vrot.slane %v909, 2
      %v1219 = vsel %vm1144, %v1216, %v1218
      %v1220 = vrot.slane %v910, 2
      %v1221 = vrot.slane %v911, 2
      %v1222 = vsel %vm1144, %v1220, %v1221
      %v1223 = vrot.slane %v912, 2
      %v1224 = vsel %vm1144, %v1221, %v1223
      %1225 = vrot.lane.b32.xlu0 %v1147, 8
      %v1226 = vpop.permute.xlu0 %1225
      %1227 = vrot.lane.b32.xlu0 %v1149, 8
      %v1228 = vpop.permute.xlu0 %1227
      %1229 = vrot.lane.b32.xlu0 %v1152, 8
      %v1230 = vpop.permute.xlu0 %1229
      %1231 = vrot.lane.b32.xlu0 %v1154, 8
      %v1232 = vpop.permute.xlu0 %1231
      %1233 = vrot.lane.b32.xlu0 %v1157, 8
      %v1234 = vpop.permute.xlu0 %1233
      %1235 = vrot.lane.b32.xlu0 %v1159, 8
      %v1236 = vpop.permute.xlu0 %1235
      %1237 = vrot.lane.b32.xlu0 %v1162, 8
      %v1238 = vpop.permute.xlu0 %1237
      %1239 = vrot.lane.b32.xlu0 %v1164, 8
      %v1240 = vpop.permute.xlu0 %1239
      %1241 = vrot.lane.b32.xlu0 %v1167, 8
      %v1242 = vpop.permute.xlu0 %1241
      %1243 = vrot.lane.b32.xlu0 %v1169, 8
      %v1244 = vpop.permute.xlu0 %1243
      %1245 = vrot.lane.b32.xlu0 %v1172, 8
      %v1246 = vpop.permute.xlu0 %1245
      %1247 = vrot.lane.b32.xlu0 %v1174, 8
      %v1248 = vpop.permute.xlu0 %1247
      %1249 = vrot.lane.b32.xlu0 %v1177, 8
      %v1250 = vpop.permute.xlu0 %1249
      %1251 = vrot.lane.b32.xlu0 %v1179, 8
      %v1252 = vpop.permute.xlu0 %1251
      %1253 = vrot.lane.b32.xlu0 %v1182, 8
      %v1254 = vpop.permute.xlu0 %1253
      %1255 = vrot.lane.b32.xlu0 %v1184, 8
      %v1256 = vpop.permute.xlu0 %1255
      %1257 = vrot.lane.b32.xlu0 %v1187, 8
      %v1258 = vpop.permute.xlu0 %1257
      %1259 = vrot.lane.b32.xlu0 %v1189, 8
      %v1260 = vpop.permute.xlu0 %1259
      %1261 = vrot.lane.b32.xlu0 %v1192, 8
      %v1262 = vpop.permute.xlu0 %1261
      %1263 = vrot.lane.b32.xlu0 %v1194, 8
      %v1264 = vpop.permute.xlu0 %1263
      %1265 = vrot.lane.b32.xlu0 %v1197, 8
      %v1266 = vpop.permute.xlu0 %1265
      %1267 = vrot.lane.b32.xlu0 %v1199, 8
      %v1268 = vpop.permute.xlu0 %1267
      %1269 = vrot.lane.b32.xlu0 %v1202, 8
      %v1270 = vpop.permute.xlu0 %1269
      %1271 = vrot.lane.b32.xlu0 %v1204, 8
      %v1272 = vpop.permute.xlu0 %1271
      %1273 = vrot.lane.b32.xlu0 %v1207, 8
      %v1274 = vpop.permute.xlu0 %1273
      %1275 = vrot.lane.b32.xlu0 %v1209, 8
      %v1276 = vpop.permute.xlu0 %1275
      %1277 = vrot.lane.b32.xlu0 %v1212, 8
      %v1278 = vpop.permute.xlu0 %1277
      %1279 = vrot.lane.b32.xlu0 %v1214, 8
      %v1280 = vpop.permute.xlu0 %1279
      %1281 = vrot.lane.b32.xlu0 %v1217, 8
      %v1282 = vpop.permute.xlu0 %1281
      %1283 = vrot.lane.b32.xlu0 %v1219, 8
      %v1284 = vpop.permute.xlu0 %1283
      %1285 = vrot.lane.b32.xlu0 %v1222, 8
      %v1286 = vpop.permute.xlu0 %1285
      %1287 = vrot.lane.b32.xlu0 %v1224, 8
      %v1288 = vpop.permute.xlu0 %1287
      %1323 = vrot.lane.b32.xlu0 %v868, 12
      %v1324 = vpop.permute.xlu0 %1323
      %1325 = vrot.lane.b32.xlu0 %v869, 12
      %v1326 = vpop.permute.xlu0 %1325
      %1327 = vrot.lane.b32.xlu0 %v871, 12
      %v1328 = vpop.permute.xlu0 %1327
      %1329 = vrot.lane.b32.xlu0 %v872, 12
      %v1330 = vpop.permute.xlu0 %1329
      %1331 = vrot.lane.b32.xlu0 %v874, 12
      %v1332 = vpop.permute.xlu0 %1331
      %1333 = vrot.lane.b32.xlu0 %v875, 12
      %v1334 = vpop.permute.xlu0 %1333
      %1335 = vrot.lane.b32.xlu0 %v877, 12
      %v1336 = vpop.permute.xlu0 %1335
      %1337 = vrot.lane.b32.xlu0 %v878, 12
      %v1338 = vpop.permute.xlu0 %1337
      %1339 = vrot.lane.b32.xlu0 %v880, 12
      %v1340 = vpop.permute.xlu0 %1339
      %1341 = vrot.lane.b32.xlu0 %v881, 12
      %v1342 = vpop.permute.xlu0 %1341
      %1343 = vrot.lane.b32.xlu0 %v883, 12
      %v1344 = vpop.permute.xlu0 %1343
      %1345 = vrot.lane.b32.xlu0 %v884, 12
      %v1346 = vpop.permute.xlu0 %1345
      %1347 = vrot.lane.b32.xlu0 %v886, 12
      %v1348 = vpop.permute.xlu0 %1347
      %1349 = vrot.lane.b32.xlu0 %v887, 12
      %v1350 = vpop.permute.xlu0 %1349
      %1351 = vrot.lane.b32.xlu0 %v889, 12
      %v1352 = vpop.permute.xlu0 %1351
      %1353 = vrot.lane.b32.xlu0 %v890, 12
      %v1354 = vpop.permute.xlu0 %1353
      %1355 = vrot.lane.b32.xlu0 %v892, 12
      %v1356 = vpop.permute.xlu0 %1355
      %1357 = vrot.lane.b32.xlu0 %v893, 12
      %v1358 = vpop.permute.xlu0 %1357
      %1359 = vrot.lane.b32.xlu0 %v895, 12
      %v1360 = vpop.permute.xlu0 %1359
      %1361 = vrot.lane.b32.xlu0 %v896, 12
      %v1362 = vpop.permute.xlu0 %1361
      %1363 = vrot.lane.b32.xlu0 %v898, 12
      %v1364 = vpop.permute.xlu0 %1363
      %1365 = vrot.lane.b32.xlu0 %v899, 12
      %v1366 = vpop.permute.xlu0 %1365
      %1367 = vrot.lane.b32.xlu0 %v901, 12
      %v1368 = vpop.permute.xlu0 %1367
      %1369 = vrot.lane.b32.xlu0 %v902, 12
      %v1370 = vpop.permute.xlu0 %1369
      %1371 = vrot.lane.b32.xlu0 %v904, 12
      %v1372 = vpop.permute.xlu0 %1371
      %1373 = vrot.lane.b32.xlu0 %v905, 12
      %v1374 = vpop.permute.xlu0 %1373
      %1375 = vrot.lane.b32.xlu0 %v907, 12
      %v1376 = vpop.permute.xlu0 %1375
      %1377 = vrot.lane.b32.xlu0 %v908, 12
      %v1378 = vpop.permute.xlu0 %1377
      %1379 = vrot.lane.b32.xlu0 %v910, 12
      %v1380 = vpop.permute.xlu0 %1379
      %1381 = vrot.lane.b32.xlu0 %v911, 12
      %v1382 = vpop.permute.xlu0 %1381
      %1383 = vrot.lane.b32.xlu0 %v913, 12
      %v1384 = vpop.permute.xlu0 %1383
      %1385 = vrot.lane.b32.xlu0 %v914, 12
      %v1386 = vpop.permute.xlu0 %1385
      %v1420 = vrot.slane %v913, 1
      %v1421 = vrot.slane %v914, 1
      %v1422 = vsel %vm967, %v1420, %v1421
      %v1423 = vrot.slane %v915, 1
      %v1424 = vsel %vm967, %v1421, %v1423
      %1425 = vrot.lane.b32.xlu0 %v975, 16
      %v1426 = vpop.permute.xlu0 %1425
      %1427 = vrot.lane.b32.xlu0 %v977, 16
      %v1428 = vpop.permute.xlu0 %1427
      %1429 = vrot.lane.b32.xlu0 %v980, 16
      %v1430 = vpop.permute.xlu0 %1429
      %1431 = vrot.lane.b32.xlu0 %v982, 16
      %v1432 = vpop.permute.xlu0 %1431
      %1433 = vrot.lane.b32.xlu0 %v985, 16
      %v1434 = vpop.permute.xlu0 %1433
      %1435 = vrot.lane.b32.xlu0 %v987, 16
      %v1436 = vpop.permute.xlu0 %1435
      %1437 = vrot.lane.b32.xlu0 %v990, 16
      %v1438 = vpop.permute.xlu0 %1437
      %1439 = vrot.lane.b32.xlu0 %v992, 16
      %v1440 = vpop.permute.xlu0 %1439
      %1441 = vrot.lane.b32.xlu0 %v995, 16
      %v1442 = vpop.permute.xlu0 %1441
      %1443 = vrot.lane.b32.xlu0 %v997, 16
      %v1444 = vpop.permute.xlu0 %1443
      %1445 = vrot.lane.b32.xlu0 %v1000, 16
      %v1446 = vpop.permute.xlu0 %1445
      %1447 = vrot.lane.b32.xlu0 %v1002, 16
      %v1448 = vpop.permute.xlu0 %1447
      %1449 = vrot.lane.b32.xlu0 %v1005, 16
      %v1450 = vpop.permute.xlu0 %1449
      %1451 = vrot.lane.b32.xlu0 %v1007, 16
      %v1452 = vpop.permute.xlu0 %1451
      %1453 = vrot.lane.b32.xlu0 %v1010, 16
      %v1454 = vpop.permute.xlu0 %1453
      %1455 = vrot.lane.b32.xlu0 %v1012, 16
      %v1456 = vpop.permute.xlu0 %1455
      %1457 = vrot.lane.b32.xlu0 %v1015, 16
      %v1458 = vpop.permute.xlu0 %1457
      %1459 = vrot.lane.b32.xlu0 %v1017, 16
      %v1460 = vpop.permute.xlu0 %1459
      %1461 = vrot.lane.b32.xlu0 %v1020, 16
      %v1462 = vpop.permute.xlu0 %1461
      %1463 = vrot.lane.b32.xlu0 %v1022, 16
      %v1464 = vpop.permute.xlu0 %1463
      %1465 = vrot.lane.b32.xlu0 %v1025, 16
      %v1466 = vpop.permute.xlu0 %1465
      %1467 = vrot.lane.b32.xlu0 %v1027, 16
      %v1468 = vpop.permute.xlu0 %1467
      %1469 = vrot.lane.b32.xlu0 %v1030, 16
      %v1470 = vpop.permute.xlu0 %1469
      %1471 = vrot.lane.b32.xlu0 %v1032, 16
      %v1472 = vpop.permute.xlu0 %1471
      %1473 = vrot.lane.b32.xlu0 %v1035, 16
      %v1474 = vpop.permute.xlu0 %1473
      %1475 = vrot.lane.b32.xlu0 %v1037, 16
      %v1476 = vpop.permute.xlu0 %1475
      %1477 = vrot.lane.b32.xlu0 %v1040, 16
      %v1478 = vpop.permute.xlu0 %1477
      %1479 = vrot.lane.b32.xlu0 %v1042, 16
      %v1480 = vpop.permute.xlu0 %1479
      %1481 = vrot.lane.b32.xlu0 %v1045, 16
      %v1482 = vpop.permute.xlu0 %1481
      %1483 = vrot.lane.b32.xlu0 %v1047, 16
      %v1484 = vpop.permute.xlu0 %1483
      %1485 = vrot.lane.b32.xlu0 %v1422, 16
      %v1486 = vpop.permute.xlu0 %1485
      %1487 = vrot.lane.b32.xlu0 %v1424, 16
      %v1488 = vpop.permute.xlu0 %1487
      %v1521 = vrot.slane %v913, 2
      %v1522 = vrot.slane %v914, 2
      %v1523 = vsel %vm1144, %v1521, %v1522
      %v1524 = vrot.slane %v915, 2
      %v1525 = vsel %vm1144, %v1522, %v1524
      %1526 = vrot.lane.b32.xlu0 %v1152, 20
      %v1527 = vpop.permute.xlu0 %1526
      %1528 = vrot.lane.b32.xlu0 %v1154, 20
      %v1529 = vpop.permute.xlu0 %1528
      %1530 = vrot.lane.b32.xlu0 %v1157, 20
      %v1531 = vpop.permute.xlu0 %1530
      %1532 = vrot.lane.b32.xlu0 %v1159, 20
      %v1533 = vpop.permute.xlu0 %1532
      %1534 = vrot.lane.b32.xlu0 %v1162, 20
      %v1535 = vpop.permute.xlu0 %1534
      %1536 = vrot.lane.b32.xlu0 %v1164, 20
      %v1537 = vpop.permute.xlu0 %1536
      %1538 = vrot.lane.b32.xlu0 %v1167, 20
      %v1539 = vpop.permute.xlu0 %1538
      %1540 = vrot.lane.b32.xlu0 %v1169, 20
      %v1541 = vpop.permute.xlu0 %1540
      %1542 = vrot.lane.b32.xlu0 %v1172, 20
      %v1543 = vpop.permute.xlu0 %1542
      %1544 = vrot.lane.b32.xlu0 %v1174, 20
      %v1545 = vpop.permute.xlu0 %1544
      %1546 = vrot.lane.b32.xlu0 %v1177, 20
      %v1547 = vpop.permute.xlu0 %1546
      %1548 = vrot.lane.b32.xlu0 %v1179, 20
      %v1549 = vpop.permute.xlu0 %1548
      %1550 = vrot.lane.b32.xlu0 %v1182, 20
      %v1551 = vpop.permute.xlu0 %1550
      %1552 = vrot.lane.b32.xlu0 %v1184, 20
      %v1553 = vpop.permute.xlu0 %1552
      %1554 = vrot.lane.b32.xlu0 %v1187, 20
      %v1555 = vpop.permute.xlu0 %1554
      %1556 = vrot.lane.b32.xlu0 %v1189, 20
      %v1557 = vpop.permute.xlu0 %1556
      %1558 = vrot.lane.b32.xlu0 %v1192, 20
      %v1559 = vpop.permute.xlu0 %1558
      %1560 = vrot.lane.b32.xlu0 %v1194, 20
      %v1561 = vpop.permute.xlu0 %1560
      %1562 = vrot.lane.b32.xlu0 %v1197, 20
      %v1563 = vpop.permute.xlu0 %1562
      %1564 = vrot.lane.b32.xlu0 %v1199, 20
      %v1565 = vpop.permute.xlu0 %1564
      %1566 = vrot.lane.b32.xlu0 %v1202, 20
      %v1567 = vpop.permute.xlu0 %1566
      %1568 = vrot.lane.b32.xlu0 %v1204, 20
      %v1569 = vpop.permute.xlu0 %1568
      %1570 = vrot.lane.b32.xlu0 %v1207, 20
      %v1571 = vpop.permute.xlu0 %1570
      %1572 = vrot.lane.b32.xlu0 %v1209, 20
      %v1573 = vpop.permute.xlu0 %1572
      %1574 = vrot.lane.b32.xlu0 %v1212, 20
      %v1575 = vpop.permute.xlu0 %1574
      %1576 = vrot.lane.b32.xlu0 %v1214, 20
      %v1577 = vpop.permute.xlu0 %1576
      %1578 = vrot.lane.b32.xlu0 %v1217, 20
      %v1579 = vpop.permute.xlu0 %1578
      %1580 = vrot.lane.b32.xlu0 %v1219, 20
      %v1581 = vpop.permute.xlu0 %1580
      %1582 = vrot.lane.b32.xlu0 %v1222, 20
      %v1583 = vpop.permute.xlu0 %1582
      %1584 = vrot.lane.b32.xlu0 %v1224, 20
      %v1585 = vpop.permute.xlu0 %1584
      %1586 = vrot.lane.b32.xlu0 %v1523, 20
      %v1587 = vpop.permute.xlu0 %1586
      %1588 = vrot.lane.b32.xlu0 %v1525, 20
      %v1589 = vpop.permute.xlu0 %1588
      %1624 = vrot.lane.b32.xlu0 %v871, 24
      %v1625 = vpop.permute.xlu0 %1624
      %1626 = vrot.lane.b32.xlu0 %v872, 24
      %v1627 = vpop.permute.xlu0 %1626
      %1628 = vrot.lane.b32.xlu0 %v874, 24
      %v1629 = vpop.permute.xlu0 %1628
      %1630 = vrot.lane.b32.xlu0 %v875, 24
      %v1631 = vpop.permute.xlu0 %1630
      %1632 = vrot.lane.b32.xlu0 %v877, 24
      %v1633 = vpop.permute.xlu0 %1632
      %1634 = vrot.lane.b32.xlu0 %v878, 24
      %v1635 = vpop.permute.xlu0 %1634
      %1636 = vrot.lane.b32.xlu0 %v880, 24
      %v1637 = vpop.permute.xlu0 %1636
      %1638 = vrot.lane.b32.xlu0 %v881, 24
      %v1639 = vpop.permute.xlu0 %1638
      %1640 = vrot.lane.b32.xlu0 %v883, 24
      %v1641 = vpop.permute.xlu0 %1640
      %1642 = vrot.lane.b32.xlu0 %v884, 24
      %v1643 = vpop.permute.xlu0 %1642
      %1644 = vrot.lane.b32.xlu0 %v886, 24
      %v1645 = vpop.permute.xlu0 %1644
      %1646 = vrot.lane.b32.xlu0 %v887, 24
      %v1647 = vpop.permute.xlu0 %1646
      %1648 = vrot.lane.b32.xlu0 %v889, 24
      %v1649 = vpop.permute.xlu0 %1648
      %1650 = vrot.lane.b32.xlu0 %v890, 24
      %v1651 = vpop.permute.xlu0 %1650
      %1652 = vrot.lane.b32.xlu0 %v892, 24
      %v1653 = vpop.permute.xlu0 %1652
      %1654 = vrot.lane.b32.xlu0 %v893, 24
      %v1655 = vpop.permute.xlu0 %1654
      %1656 = vrot.lane.b32.xlu0 %v895, 24
      %v1657 = vpop.permute.xlu0 %1656
      %1658 = vrot.lane.b32.xlu0 %v896, 24
      %v1659 = vpop.permute.xlu0 %1658
      %1660 = vrot.lane.b32.xlu0 %v898, 24
      %v1661 = vpop.permute.xlu0 %1660
      %1662 = vrot.lane.b32.xlu0 %v899, 24
      %v1663 = vpop.permute.xlu0 %1662
      %1664 = vrot.lane.b32.xlu0 %v901, 24
      %v1665 = vpop.permute.xlu0 %1664
      %1666 = vrot.lane.b32.xlu0 %v902, 24
      %v1667 = vpop.permute.xlu0 %1666
      %1668 = vrot.lane.b32.xlu0 %v904, 24
      %v1669 = vpop.permute.xlu0 %1668
      %1670 = vrot.lane.b32.xlu0 %v905, 24
      %v1671 = vpop.permute.xlu0 %1670
      %1672 = vrot.lane.b32.xlu0 %v907, 24
      %v1673 = vpop.permute.xlu0 %1672
      %1674 = vrot.lane.b32.xlu0 %v908, 24
      %v1675 = vpop.permute.xlu0 %1674
      %1676 = vrot.lane.b32.xlu0 %v910, 24
      %v1677 = vpop.permute.xlu0 %1676
      %1678 = vrot.lane.b32.xlu0 %v911, 24
      %v1679 = vpop.permute.xlu0 %1678
      %1680 = vrot.lane.b32.xlu0 %v913, 24
      %v1681 = vpop.permute.xlu0 %1680
      %1682 = vrot.lane.b32.xlu0 %v914, 24
      %v1683 = vpop.permute.xlu0 %1682
      %1684 = vrot.lane.b32.xlu0 %v916, 24
      %v1685 = vpop.permute.xlu0 %1684
      %1686 = vrot.lane.b32.xlu0 %v917, 24
      %v1687 = vpop.permute.xlu0 %1686
      %v1721 = vrot.slane %v916, 1
      %v1722 = vrot.slane %v917, 1
      %v1723 = vsel %vm967, %v1721, %v1722
      %v1724 = vrot.slane %v918, 1
      %v1725 = vsel %vm967, %v1722, %v1724
      %1726 = vrot.lane.b32.xlu0 %v980, 28
      %v1727 = vpop.permute.xlu0 %1726
      %1728 = vrot.lane.b32.xlu0 %v982, 28
      %v1729 = vpop.permute.xlu0 %1728
      %1730 = vrot.lane.b32.xlu0 %v985, 28
      %v1731 = vpop.permute.xlu0 %1730
      %1732 = vrot.lane.b32.xlu0 %v987, 28
      %v1733 = vpop.permute.xlu0 %1732
      %1734 = vrot.lane.b32.xlu0 %v990, 28
      %v1735 = vpop.permute.xlu0 %1734
      %1736 = vrot.lane.b32.xlu0 %v992, 28
      %v1737 = vpop.permute.xlu0 %1736
      %1738 = vrot.lane.b32.xlu0 %v995, 28
      %v1739 = vpop.permute.xlu0 %1738
      %1740 = vrot.lane.b32.xlu0 %v997, 28
      %v1741 = vpop.permute.xlu0 %1740
      %1742 = vrot.lane.b32.xlu0 %v1000, 28
      %v1743 = vpop.permute.xlu0 %1742
      %1744 = vrot.lane.b32.xlu0 %v1002, 28
      %v1745 = vpop.permute.xlu0 %1744
      %1746 = vrot.lane.b32.xlu0 %v1005, 28
      %v1747 = vpop.permute.xlu0 %1746
      %1748 = vrot.lane.b32.xlu0 %v1007, 28
      %v1749 = vpop.permute.xlu0 %1748
      %1750 = vrot.lane.b32.xlu0 %v1010, 28
      %v1751 = vpop.permute.xlu0 %1750
      %1752 = vrot.lane.b32.xlu0 %v1012, 28
      %v1753 = vpop.permute.xlu0 %1752
      %1754 = vrot.lane.b32.xlu0 %v1015, 28
      %v1755 = vpop.permute.xlu0 %1754
      %1756 = vrot.lane.b32.xlu0 %v1017, 28
      %v1757 = vpop.permute.xlu0 %1756
      %1758 = vrot.lane.b32.xlu0 %v1020, 28
      %v1759 = vpop.permute.xlu0 %1758
      %1760 = vrot.lane.b32.xlu0 %v1022, 28
      %v1761 = vpop.permute.xlu0 %1760
      %1762 = vrot.lane.b32.xlu0 %v1025, 28
      %v1763 = vpop.permute.xlu0 %1762
      %1764 = vrot.lane.b32.xlu0 %v1027, 28
      %v1765 = vpop.permute.xlu0 %1764
      %1766 = vrot.lane.b32.xlu0 %v1030, 28
      %v1767 = vpop.permute.xlu0 %1766
      %1768 = vrot.lane.b32.xlu0 %v1032, 28
      %v1769 = vpop.permute.xlu0 %1768
      %1770 = vrot.lane.b32.xlu0 %v1035, 28
      %v1771 = vpop.permute.xlu0 %1770
      %1772 = vrot.lane.b32.xlu0 %v1037, 28
      %v1773 = vpop.permute.xlu0 %1772
      %1774 = vrot.lane.b32.xlu0 %v1040, 28
      %v1775 = vpop.permute.xlu0 %1774
      %1776 = vrot.lane.b32.xlu0 %v1042, 28
      %v1777 = vpop.permute.xlu0 %1776
      %1778 = vrot.lane.b32.xlu0 %v1045, 28
      %v1779 = vpop.permute.xlu0 %1778
      %1780 = vrot.lane.b32.xlu0 %v1047, 28
      %v1781 = vpop.permute.xlu0 %1780
      %1782 = vrot.lane.b32.xlu0 %v1422, 28
      %v1783 = vpop.permute.xlu0 %1782
      %1784 = vrot.lane.b32.xlu0 %v1424, 28
      %v1785 = vpop.permute.xlu0 %1784
      %1786 = vrot.lane.b32.xlu0 %v1723, 28
      %v1787 = vpop.permute.xlu0 %1786
      %1788 = vrot.lane.b32.xlu0 %v1725, 28
      %v1789 = vpop.permute.xlu0 %1788
      %v1822 = vrot.slane %v916, 2
      %v1823 = vrot.slane %v917, 2
      %v1824 = vsel %vm1144, %v1822, %v1823
      %v1825 = vrot.slane %v918, 2
      %v1826 = vsel %vm1144, %v1823, %v1825
      %1827 = vrot.lane.b32.xlu0 %v1157, 32
      %v1828 = vpop.permute.xlu0 %1827
      %1829 = vrot.lane.b32.xlu0 %v1159, 32
      %v1830 = vpop.permute.xlu0 %1829
      %1831 = vrot.lane.b32.xlu0 %v1162, 32
      %v1832 = vpop.permute.xlu0 %1831
      %1833 = vrot.lane.b32.xlu0 %v1164, 32
      %v1834 = vpop.permute.xlu0 %1833
      %1835 = vrot.lane.b32.xlu0 %v1167, 32
      %v1836 = vpop.permute.xlu0 %1835
      %1837 = vrot.lane.b32.xlu0 %v1169, 32
      %v1838 = vpop.permute.xlu0 %1837
      %1839 = vrot.lane.b32.xlu0 %v1172, 32
      %v1840 = vpop.permute.xlu0 %1839
      %1841 = vrot.lane.b32.xlu0 %v1174, 32
      %v1842 = vpop.permute.xlu0 %1841
      %1843 = vrot.lane.b32.xlu0 %v1177, 32
      %v1844 = vpop.permute.xlu0 %1843
      %1845 = vrot.lane.b32.xlu0 %v1179, 32
      %v1846 = vpop.permute.xlu0 %1845
      %1847 = vrot.lane.b32.xlu0 %v1182, 32
      %v1848 = vpop.permute.xlu0 %1847
      %1849 = vrot.lane.b32.xlu0 %v1184, 32
      %v1850 = vpop.permute.xlu0 %1849
      %1851 = vrot.lane.b32.xlu0 %v1187, 32
      %v1852 = vpop.permute.xlu0 %1851
      %1853 = vrot.lane.b32.xlu0 %v1189, 32
      %v1854 = vpop.permute.xlu0 %1853
      %1855 = vrot.lane.b32.xlu0 %v1192, 32
      %v1856 = vpop.permute.xlu0 %1855
      %1857 = vrot.lane.b32.xlu0 %v1194, 32
      %v1858 = vpop.permute.xlu0 %1857
      %1859 = vrot.lane.b32.xlu0 %v1197, 32
      %v1860 = vpop.permute.xlu0 %1859
      %1861 = vrot.lane.b32.xlu0 %v1199, 32
      %v1862 = vpop.permute.xlu0 %1861
      %1863 = vrot.lane.b32.xlu0 %v1202, 32
      %v1864 = vpop.permute.xlu0 %1863
      %1865 = vrot.lane.b32.xlu0 %v1204, 32
      %v1866 = vpop.permute.xlu0 %1865
      %1867 = vrot.lane.b32.xlu0 %v1207, 32
      %v1868 = vpop.permute.xlu0 %1867
      %1869 = vrot.lane.b32.xlu0 %v1209, 32
      %v1870 = vpop.permute.xlu0 %1869
      %1871 = vrot.lane.b32.xlu0 %v1212, 32
      %v1872 = vpop.permute.xlu0 %1871
      %1873 = vrot.lane.b32.xlu0 %v1214, 32
      %v1874 = vpop.permute.xlu0 %1873
      %1875 = vrot.lane.b32.xlu0 %v1217, 32
      %v1876 = vpop.permute.xlu0 %1875
      %1877 = vrot.lane.b32.xlu0 %v1219, 32
      %v1878 = vpop.permute.xlu0 %1877
      %1879 = vrot.lane.b32.xlu0 %v1222, 32
      %v1880 = vpop.permute.xlu0 %1879
      %1881 = vrot.lane.b32.xlu0 %v1224, 32
      %v1882 = vpop.permute.xlu0 %1881
      %1883 = vrot.lane.b32.xlu0 %v1523, 32
      %v1884 = vpop.permute.xlu0 %1883
      %1885 = vrot.lane.b32.xlu0 %v1525, 32
      %v1886 = vpop.permute.xlu0 %1885
      %1887 = vrot.lane.b32.xlu0 %v1824, 32
      %v1888 = vpop.permute.xlu0 %1887
      %1889 = vrot.lane.b32.xlu0 %v1826, 32
      %v1890 = vpop.permute.xlu0 %1889
      %v1923 = vsel %vm287, %v865, %v1049
      %v1924 = vsel %vm287, %v866, %v1051
      %v1925 = vsel %vm287, %v868, %v1053
      %v1926 = vsel %vm287, %v869, %v1055
      %v1927 = vsel %vm287, %v871, %v1057
      %v1928 = vsel %vm287, %v872, %v1059
      %v1929 = vsel %vm287, %v874, %v1061
      %v1930 = vsel %vm287, %v875, %v1063
      %v1931 = vsel %vm287, %v877, %v1065
      %v1932 = vsel %vm287, %v878, %v1067
      %v1933 = vsel %vm287, %v880, %v1069
      %v1934 = vsel %vm287, %v881, %v1071
      %v1935 = vsel %vm287, %v883, %v1073
      %v1936 = vsel %vm287, %v884, %v1075
      %v1937 = vsel %vm287, %v886, %v1077
      %v1938 = vsel %vm287, %v887, %v1079
      %v1939 = vsel %vm287, %v889, %v1081
      %v1940 = vsel %vm287, %v890, %v1083
      %v1941 = vsel %vm287, %v892, %v1085
      %v1942 = vsel %vm287, %v893, %v1087
      %v1943 = vsel %vm287, %v895, %v1089
      %v1944 = vsel %vm287, %v896, %v1091
      %v1945 = vsel %vm287, %v898, %v1093
      %v1946 = vsel %vm287, %v899, %v1095
      %v1947 = vsel %vm287, %v901, %v1097
      %v1948 = vsel %vm287, %v902, %v1099
      %v1949 = vsel %vm287, %v904, %v1101
      %v1950 = vsel %vm287, %v905, %v1103
      %v1951 = vsel %vm287, %v907, %v1105
      %v1952 = vsel %vm287, %v908, %v1107
      %v1953 = vsel %vm287, %v910, %v1109
      %v1954 = vsel %vm287, %v911, %v1111
      %vm1955 = vcmask 64512
      %v1956 = vsel %vm1955, %v1923, %v1226
      %v1957 = vsel %vm1955, %v1924, %v1228
      %v1958 = vsel %vm1955, %v1925, %v1230
      %v1959 = vsel %vm1955, %v1926, %v1232
      %v1960 = vsel %vm1955, %v1927, %v1234
      %v1961 = vsel %vm1955, %v1928, %v1236
      %v1962 = vsel %vm1955, %v1929, %v1238
      %v1963 = vsel %vm1955, %v1930, %v1240
      %v1964 = vsel %vm1955, %v1931, %v1242
      %v1965 = vsel %vm1955, %v1932, %v1244
      %v1966 = vsel %vm1955, %v1933, %v1246
      %v1967 = vsel %vm1955, %v1934, %v1248
      %v1968 = vsel %vm1955, %v1935, %v1250
      %v1969 = vsel %vm1955, %v1936, %v1252
      %v1970 = vsel %vm1955, %v1937, %v1254
      %v1971 = vsel %vm1955, %v1938, %v1256
      %v1972 = vsel %vm1955, %v1939, %v1258
      %v1973 = vsel %vm1955, %v1940, %v1260
      %v1974 = vsel %vm1955, %v1941, %v1262
      %v1975 = vsel %vm1955, %v1942, %v1264
      %v1976 = vsel %vm1955, %v1943, %v1266
      %v1977 = vsel %vm1955, %v1944, %v1268
      %v1978 = vsel %vm1955, %v1945, %v1270
      %v1979 = vsel %vm1955, %v1946, %v1272
      %v1980 = vsel %vm1955, %v1947, %v1274
      %v1981 = vsel %vm1955, %v1948, %v1276
      %v1982 = vsel %vm1955, %v1949, %v1278
      %v1983 = vsel %vm1955, %v1950, %v1280
      %v1984 = vsel %vm1955, %v1951, %v1282
      %v1985 = vsel %vm1955, %v1952, %v1284
      %v1986 = vsel %vm1955, %v1953, %v1286
      %v1987 = vsel %vm1955, %v1954, %v1288
      %vm1988 = vcmask 97280
      %v1989 = vsel %vm1988, %v1956, %v1324
      %v1990 = vsel %vm1988, %v1957, %v1326
      %v1991 = vsel %vm1988, %v1958, %v1328
      %v1992 = vsel %vm1988, %v1959, %v1330
      %v1993 = vsel %vm1988, %v1960, %v1332
      %v1994 = vsel %vm1988, %v1961, %v1334
      %v1995 = vsel %vm1988, %v1962, %v1336
      %v1996 = vsel %vm1988, %v1963, %v1338
      %v1997 = vsel %vm1988, %v1964, %v1340
      %v1998 = vsel %vm1988, %v1965, %v1342
      %v1999 = vsel %vm1988, %v1966, %v1344
      %v2000 = vsel %vm1988, %v1967, %v1346
      %v2001 = vsel %vm1988, %v1968, %v1348
      %v2002 = vsel %vm1988, %v1969, %v1350
      %v2003 = vsel %vm1988, %v1970, %v1352
      %v2004 = vsel %vm1988, %v1971, %v1354
      %v2005 = vsel %vm1988, %v1972, %v1356
      %v2006 = vsel %vm1988, %v1973, %v1358
      %v2007 = vsel %vm1988, %v1974, %v1360
      %v2008 = vsel %vm1988, %v1975, %v1362
      %v2009 = vsel %vm1988, %v1976, %v1364
      %v2010 = vsel %vm1988, %v1977, %v1366
      %v2011 = vsel %vm1988, %v1978, %v1368
      %v2012 = vsel %vm1988, %v1979, %v1370
      %v2013 = vsel %vm1988, %v1980, %v1372
      %v2014 = vsel %vm1988, %v1981, %v1374
      %v2015 = vsel %vm1988, %v1982, %v1376
      %v2016 = vsel %vm1988, %v1983, %v1378
      %v2017 = vsel %vm1988, %v1984, %v1380
      %v2018 = vsel %vm1988, %v1985, %v1382
      %v2019 = vsel %vm1988, %v1986, %v1384
      %v2020 = vsel %vm1988, %v1987, %v1386
      %vm2021 = vcmask 130048
      %v2022 = vsel %vm2021, %v1989, %v1426
      %v2023 = vsel %vm2021, %v1990, %v1428
      %v2024 = vsel %vm2021, %v1991, %v1430
      %v2025 = vsel %vm2021, %v1992, %v1432
      %v2026 = vsel %vm2021, %v1993, %v1434
      %v2027 = vsel %vm2021, %v1994, %v1436
      %v2028 = vsel %vm2021, %v1995, %v1438
      %v2029 = vsel %vm2021, %v1996, %v1440
      %v2030 = vsel %vm2021, %v1997, %v1442
      %v2031 = vsel %vm2021, %v1998, %v1444
      %v2032 = vsel %vm2021, %v1999, %v1446
      %v2033 = vsel %vm2021, %v2000, %v1448
      %v2034 = vsel %vm2021, %v2001, %v1450
      %v2035 = vsel %vm2021, %v2002, %v1452
      %v2036 = vsel %vm2021, %v2003, %v1454
      %v2037 = vsel %vm2021, %v2004, %v1456
      %v2038 = vsel %vm2021, %v2005, %v1458
      %v2039 = vsel %vm2021, %v2006, %v1460
      %v2040 = vsel %vm2021, %v2007, %v1462
      %v2041 = vsel %vm2021, %v2008, %v1464
      %v2042 = vsel %vm2021, %v2009, %v1466
      %v2043 = vsel %vm2021, %v2010, %v1468
      %v2044 = vsel %vm2021, %v2011, %v1470
      %v2045 = vsel %vm2021, %v2012, %v1472
      %v2046 = vsel %vm2021, %v2013, %v1474
      %v2047 = vsel %vm2021, %v2014, %v1476
      %v2048 = vsel %vm2021, %v2015, %v1478
      %v2049 = vsel %vm2021, %v2016, %v1480
      %v2050 = vsel %vm2021, %v2017, %v1482
      %v2051 = vsel %vm2021, %v2018, %v1484
      %v2052 = vsel %vm2021, %v2019, %v1486
      %v2053 = vsel %vm2021, %v2020, %v1488
      %vm2054 = vcmask 162816
      %v2055 = vsel %vm2054, %v2022, %v1527
      %v2056 = vsel %vm2054, %v2023, %v1529
      %v2057 = vsel %vm2054, %v2024, %v1531
      %v2058 = vsel %vm2054, %v2025, %v1533
      %v2059 = vsel %vm2054, %v2026, %v1535
      %v2060 = vsel %vm2054, %v2027, %v1537
      %v2061 = vsel %vm2054, %v2028, %v1539
      %v2062 = vsel %vm2054, %v2029, %v1541
      %v2063 = vsel %vm2054, %v2030, %v1543
      %v2064 = vsel %vm2054, %v2031, %v1545
      %v2065 = vsel %vm2054, %v2032, %v1547
      %v2066 = vsel %vm2054, %v2033, %v1549
      %v2067 = vsel %vm2054, %v2034, %v1551
      %v2068 = vsel %vm2054, %v2035, %v1553
      %v2069 = vsel %vm2054, %v2036, %v1555
      %v2070 = vsel %vm2054, %v2037, %v1557
      %v2071 = vsel %vm2054, %v2038, %v1559
      %v2072 = vsel %vm2054, %v2039, %v1561
      %v2073 = vsel %vm2054, %v2040, %v1563
      %v2074 = vsel %vm2054, %v2041, %v1565
      %v2075 = vsel %vm2054, %v2042, %v1567
      %v2076 = vsel %vm2054, %v2043, %v1569
      %v2077 = vsel %vm2054, %v2044, %v1571
      %v2078 = vsel %vm2054, %v2045, %v1573
      %v2079 = vsel %vm2054, %v2046, %v1575
      %v2080 = vsel %vm2054, %v2047, %v1577
      %v2081 = vsel %vm2054, %v2048, %v1579
      %v2082 = vsel %vm2054, %v2049, %v1581
      %v2083 = vsel %vm2054, %v2050, %v1583
      %v2084 = vsel %vm2054, %v2051, %v1585
      %v2085 = vsel %vm2054, %v2052, %v1587
      %v2086 = vsel %vm2054, %v2053, %v1589
      %vm2087 = vcmask 195584
      %v2088 = vsel %vm2087, %v2055, %v1625
      %v2089 = vsel %vm2087, %v2056, %v1627
      %v2090 = vsel %vm2087, %v2057, %v1629
      %v2091 = vsel %vm2087, %v2058, %v1631
      %v2092 = vsel %vm2087, %v2059, %v1633
      %v2093 = vsel %vm2087, %v2060, %v1635
      %v2094 = vsel %vm2087, %v2061, %v1637
      %v2095 = vsel %vm2087, %v2062, %v1639
      %v2096 = vsel %vm2087, %v2063, %v1641
      %v2097 = vsel %vm2087, %v2064, %v1643
      %v2098 = vsel %vm2087, %v2065, %v1645
      %v2099 = vsel %vm2087, %v2066, %v1647
      %v2100 = vsel %vm2087, %v2067, %v1649
      %v2101 = vsel %vm2087, %v2068, %v1651
      %v2102 = vsel %vm2087, %v2069, %v1653
      %v2103 = vsel %vm2087, %v2070, %v1655
      %v2104 = vsel %vm2087, %v2071, %v1657
      %v2105 = vsel %vm2087, %v2072, %v1659
      %v2106 = vsel %vm2087, %v2073, %v1661
      %v2107 = vsel %vm2087, %v2074, %v1663
      %v2108 = vsel %vm2087, %v2075, %v1665
      %v2109 = vsel %vm2087, %v2076, %v1667
      %v2110 = vsel %vm2087, %v2077, %v1669
      %v2111 = vsel %vm2087, %v2078, %v1671
      %v2112 = vsel %vm2087, %v2079, %v1673
      %v2113 = vsel %vm2087, %v2080, %v1675
      %v2114 = vsel %vm2087, %v2081, %v1677
      %v2115 = vsel %vm2087, %v2082, %v1679
      %v2116 = vsel %vm2087, %v2083, %v1681
      %v2117 = vsel %vm2087, %v2084, %v1683
      %v2118 = vsel %vm2087, %v2085, %v1685
      %v2119 = vsel %vm2087, %v2086, %v1687
      %vm2120 = vcmask 228352
      %v2121 = vsel %vm2120, %v2088, %v1727
      %v2122 = vsel %vm2120, %v2089, %v1729
      %v2123 = vsel %vm2120, %v2090, %v1731
      %v2124 = vsel %vm2120, %v2091, %v1733
      %v2125 = vsel %vm2120, %v2092, %v1735
      %v2126 = vsel %vm2120, %v2093, %v1737
      %v2127 = vsel %vm2120, %v2094, %v1739
      %v2128 = vsel %vm2120, %v2095, %v1741
      %v2129 = vsel %vm2120, %v2096, %v1743
      %v2130 = vsel %vm2120, %v2097, %v1745
      %v2131 = vsel %vm2120, %v2098, %v1747
      %v2132 = vsel %vm2120, %v2099, %v1749
      %v2133 = vsel %vm2120, %v2100, %v1751
      %v2134 = vsel %vm2120, %v2101, %v1753
      %v2135 = vsel %vm2120, %v2102, %v1755
      %v2136 = vsel %vm2120, %v2103, %v1757
      %v2137 = vsel %vm2120, %v2104, %v1759
      %v2138 = vsel %vm2120, %v2105, %v1761
      %v2139 = vsel %vm2120, %v2106, %v1763
      %v2140 = vsel %vm2120, %v2107, %v1765
      %v2141 = vsel %vm2120, %v2108, %v1767
      %v2142 = vsel %vm2120, %v2109, %v1769
      %v2143 = vsel %vm2120, %v2110, %v1771
      %v2144 = vsel %vm2120, %v2111, %v1773
      %v2145 = vsel %vm2120, %v2112, %v1775
      %v2146 = vsel %vm2120, %v2113, %v1777
      %v2147 = vsel %vm2120, %v2114, %v1779
      %v2148 = vsel %vm2120, %v2115, %v1781
      %v2149 = vsel %vm2120, %v2116, %v1783
      %v2150 = vsel %vm2120, %v2117, %v1785
      %v2151 = vsel %vm2120, %v2118, %v1787
      %v2152 = vsel %vm2120, %v2119, %v1789
      %vm2153 = vcmask 261120
      %v2154 = vsel %vm2153, %v2121, %v1828
      %v2155 = vsel %vm2153, %v2122, %v1830
      %v2156 = vsel %vm2153, %v2123, %v1832
      %v2157 = vsel %vm2153, %v2124, %v1834
      %v2158 = vsel %vm2153, %v2125, %v1836
      %v2159 = vsel %vm2153, %v2126, %v1838
      %v2160 = vsel %vm2153, %v2127, %v1840
      %v2161 = vsel %vm2153, %v2128, %v1842
      %v2162 = vsel %vm2153, %v2129, %v1844
      %v2163 = vsel %vm2153, %v2130, %v1846
      %v2164 = vsel %vm2153, %v2131, %v1848
      %v2165 = vsel %vm2153, %v2132, %v1850
      %v2166 = vsel %vm2153, %v2133, %v1852
      %v2167 = vsel %vm2153, %v2134, %v1854
      %v2168 = vsel %vm2153, %v2135, %v1856
      %v2169 = vsel %vm2153, %v2136, %v1858
      %v2170 = vsel %vm2153, %v2137, %v1860
      %v2171 = vsel %vm2153, %v2138, %v1862
      %v2172 = vsel %vm2153, %v2139, %v1864
      %v2173 = vsel %vm2153, %v2140, %v1866
      %v2174 = vsel %vm2153, %v2141, %v1868
      %v2175 = vsel %vm2153, %v2142, %v1870
      %v2176 = vsel %vm2153, %v2143, %v1872
      %v2177 = vsel %vm2153, %v2144, %v1874
      %v2178 = vsel %vm2153, %v2145, %v1876
      %v2179 = vsel %vm2153, %v2146, %v1878
      %v2180 = vsel %vm2153, %v2147, %v1880
      %v2181 = vsel %vm2153, %v2148, %v1882
      %v2182 = vsel %vm2153, %v2149, %v1884
      %v2183 = vsel %vm2153, %v2150, %v1886
      %v2184 = vsel %vm2153, %v2151, %v1888
      %v2185 = vsel %vm2153, %v2152, %v1890
      %v2186 = vld [vmem:[%s3] sm:$0xff]
      %v2187 = vld [vmem:[%s3 + $0x8] sm:$0xff]
      %v2188 = vld [vmem:[%s3 + $0x10] sm:$0xff]
      %v2189 = vld [vmem:[%s3 + $0x18] sm:$0xff]
      %v2190 = vld [vmem:[%s3 + $0x20] sm:$0xf]
      %v2191 = vld [vmem:[%s4] sm:$0x1]
      %v2193 = vlaneseq
      %v2194 = vshrl.u32 %v2193, 7
      %v2195 = vsub.s32 0, %v2194
      %v2196 = vrot.slane %v2191, %v2195
      %vm2198 = vcmask 293888
      %v2200 = vsel %vm2198, %v2154, 0
      %v2203 = vsel %vm2198, %v2155, 0
      %v2206 = vsel %vm2198, %v2156, 0
      %v2209 = vsel %vm2198, %v2157, 0
      %v2212 = vsel %vm2198, %v2158, 0
      %v2215 = vsel %vm2198, %v2159, 0
      %v2218 = vsel %vm2198, %v2160, 0
      %v2221 = vsel %vm2198, %v2161, 0
      %v2224 = vsel %vm2198, %v2162, 0
      %v2227 = vsel %vm2198, %v2163, 0
      %v2230 = vsel %vm2198, %v2164, 0
      %v2233 = vsel %vm2198, %v2165, 0
      %v2236 = vsel %vm2198, %v2166, 0
      %v2239 = vsel %vm2198, %v2167, 0
      %v2242 = vsel %vm2198, %v2168, 0
      %v2245 = vsel %vm2198, %v2169, 0
      %v2248 = vsel %vm2198, %v2170, 0
      %v2251 = vsel %vm2198, %v2171, 0
      %v2254 = vsel %vm2198, %v2172, 0
      %v2257 = vsel %vm2198, %v2173, 0
      %v2260 = vsel %vm2198, %v2174, 0
      %v2263 = vsel %vm2198, %v2175, 0
      %v2266 = vsel %vm2198, %v2176, 0
      %v2269 = vsel %vm2198, %v2177, 0
      %v2272 = vsel %vm2198, %v2178, 0
      %v2275 = vsel %vm2198, %v2179, 0
      %v2278 = vsel %vm2198, %v2180, 0
      %v2281 = vsel %vm2198, %v2181, 0
      %v2284 = vsel %vm2198, %v2182, 0
      %v2287 = vsel %vm2198, %v2183, 0
      %v2290 = vsel %vm2198, %v2184, 0
      %v2293 = vsel %vm2198, %v2185, 0
      %v2296 = vsel %vm450, %v2190, 0
      %2298 = vmatprep.subr.mxu0 0.0
      %2299 = vmatpush1.msra.mxu0 %v2186
      %2300 = vmatprep.subr.mxu0 0.0
      %2301 = vmatpush1.msra.mxu0 %v2187
      %2302 = vmatprep.subr.mxu0 0.0
      %2303 = vmatpush1.msra.mxu0 %v2188
      %2304 = vmatprep.subr.mxu0 0.0
      %2305 = vmatpush1.msra.mxu0 %v2189
      %2306 = vmatprep.subr.mxu0 0.0
      %2307 = vmatpush1.msra.mxu0 %v2296
      %2308 = vmatprep.subr.mxu0 0.0
      %2309 = vmatpush1.msra.mxu0 0.0
      %2310 = vmatprep.subr.mxu0 0.0
      %2311 = vmatpush1.msra.mxu0 0.0
      %2312 = vmatprep.subr.mxu0 0.0
      %2313 = vmatpush1.msra.mxu0 0.0
      %2314 = vmatprep.subr.mxu0 0.0
      %2315 = vmatpush1.msra.mxu0 0.0
      %2316 = vmatprep.subr.mxu0 0.0
      %2317 = vmatpush1.msra.mxu0 0.0
      %2318 = vmatprep.subr.mxu0 0.0
      %2319 = vmatpush1.msra.mxu0 0.0
      %2320 = vmatprep.subr.mxu0 0.0
      %2321 = vmatpush1.msra.mxu0 0.0
      %2322 = vmatprep.subr.mxu0 0.0
      %2323 = vmatpush1.msra.mxu0 0.0
      %2324 = vmatprep.subr.mxu0 0.0
      %2325 = vmatpush1.msra.mxu0 0.0
      %2326 = vmatprep.subr.mxu0 0.0
      %2327 = vmatpush1.msra.mxu0 0.0
      %2328 = vmatprep.subr.mxu0 0.0
      %2329 = vmatpush1.msra.mxu0 0.0
      %2330 = vmatprep.subr.mxu0 0.0
      %2331 = vmatpush1.msra.mxu0 0.0
      %2332 = vmatprep.subr.mxu0 0.0
      %2333 = vmatpush1.msra.mxu0 0.0
      %2334 = vmatprep.subr.mxu0 0.0
      %2335 = vmatpush1.msra.mxu0 0.0
      %2336 = vmatprep.subr.mxu0 0.0
      %2337 = vmatpush1.msra.mxu0 0.0
      %2338 = vmatprep.subr.mxu0 0.0
      %2339 = vmatpush1.msra.mxu0 0.0
      %2340 = vmatprep.subr.mxu0 0.0
      %2341 = vmatpush1.msra.mxu0 0.0
      %2342 = vmatprep.subr.mxu0 0.0
      %2343 = vmatpush1.msra.mxu0 0.0
      %2344 = vmatprep.subr.mxu0 0.0
      %2345 = vmatpush1.msra.mxu0 0.0
      %2346 = vmatprep.subr.mxu0 0.0
      %2347 = vmatpush1.msra.mxu0 0.0
      %2348 = vmatprep.subr.mxu0 0.0
      %2349 = vmatpush1.msra.mxu0 0.0
      %2350 = vmatprep.subr.mxu0 0.0
      %2351 = vmatpush1.msra.mxu0 0.0
      %2352 = vmatprep.subr.mxu0 0.0
      %2353 = vmatpush1.msra.mxu0 0.0
      %2354 = vmatprep.subr.mxu0 0.0
      %2355 = vmatpush1.msra.mxu0 0.0
      %2356 = vmatprep.subr.mxu0 0.0
      %2357 = vmatpush1.msra.mxu0 0.0
      %2358 = vmatprep.subr.mxu0 0.0
      %2359 = vmatpush1.msra.mxu0 0.0
      %2360 = vmatprep.subr.mxu0 0.0
      %2361 = vmatpush1.msra.mxu0 0.0
      %2362 = vmatprep.mubr.f32.mxu0 0.0
      %2363 = vmatmul.mubr.f32.gmra.mrb[0].mxu0 %v2200
      %v2364 = vpop.f32.mrb[0].mxu0
      %v2365 = vadd.f32 %v2196, %v2364
      %v2366 = vpop.f32.mrb[0].mxu0
      %2367 = vmatprep.mubr.f32.mxu0 0.0
      %2368 = vmatmul.mubr.f32.gmra.mrb[0].mxu0 %v2203
      %v2369 = vpop.f32.mrb[0].mxu0
      %v2370 = vadd.f32 %v2196, %v2369
      %v2371 = vpop.f32.mrb[0].mxu0
      %2372 = vmatprep.mubr.f32.mxu0 0.0
      %2373 = vmatmul.mubr.f32.gmra.mrb[0].mxu0 %v2206
      %v2374 = vpop.f32.mrb[0].mxu0
      %v2375 = vadd.f32 %v2196, %v2374
      %v2376 = vpop.f32.mrb[0].mxu0
      %2377 = vmatprep.mubr.f32.mxu0 0.0
      %2378 = vmatmul.mubr.f32.gmra.mrb[0].mxu0 %v2209
      %v2379 = vpop.f32.mrb[0].mxu0
      %v2380 = vadd.f32 %v2196, %v2379
      %v2381 = vpop.f32.mrb[0].mxu0
      %2382 = vmatprep.mubr.f32.mxu0 0.0
      %2383 = vmatmul.mubr.f32.gmra.mrb[0].mxu0 %v2212
      %v2384 = vpop.f32.mrb[0].mxu0
      %v2385 = vadd.f32 %v2196, %v2384
      %v2386 = vpop.f32.mrb[0].mxu0
      %2387 = vmatprep.mubr.f32.mxu0 0.0
      %2388 = vmatmul.mubr.f32.gmra.mrb[0].mxu0 %v2215
      %v2389 = vpop.f32.mrb[0].mxu0
      %v2390 = vadd.f32 %v2196, %v2389
      %v2391 = vpop.f32.mrb[0].mxu0
      %2392 = vmatprep.mubr.f32.mxu0 0.0
      %2393 = vmatmul.mubr.f32.gmra.mrb[0].mxu0 %v2218
      %v2394 = vpop.f32.mrb[0].mxu0
      %v2395 = vadd.f32 %v2196, %v2394
      %v2396 = vpop.f32.mrb[0].mxu0
      %2397 = vmatprep.mubr.f32.mxu0 0.0
      %2398 = vmatmul.mubr.f32.gmra.mrb[0].mxu0 %v2221
      %v2399 = vpop.f32.mrb[0].mxu0
      %v2400 = vadd.f32 %v2196, %v2399
      %v2401 = vpop.f32.mrb[0].mxu0
      %2402 = vmatprep.mubr.f32.mxu0 0.0
      %2403 = vmatmul.mubr.f32.gmra.mrb[0].mxu0 %v2224
      %v2404 = vpop.f32.mrb[0].mxu0
      %v2405 = vadd.f32 %v2196, %v2404
      %v2406 = vpop.f32.mrb[0].mxu0
      %2407 = vmatprep.mubr.f32.mxu0 0.0
      %2408 = vmatmul.mubr.f32.gmra.mrb[0].mxu0 %v2227
      %v2409 = vpop.f32.mrb[0].mxu0
      %v2410 = vadd.f32 %v2196, %v2409
      %v2411 = vpop.f32.mrb[0].mxu0
      %2412 = vmatprep.mubr.f32.mxu0 0.0
      %2413 = vmatmul.mubr.f32.gmra.mrb[0].mxu0 %v2230
      %v2414 = vpop.f32.mrb[0].mxu0
      %v2415 = vadd.f32 %v2196, %v2414
      %v2416 = vpop.f32.mrb[0].mxu0
      %2417 = vmatprep.mubr.f32.mxu0 0.0
      %2418 = vmatmul.mubr.f32.gmra.mrb[0].mxu0 %v2233
      %v2419 = vpop.f32.mrb[0].mxu0
      %v2420 = vadd.f32 %v2196, %v2419
      %v2421 = vpop.f32.mrb[0].mxu0
      %2422 = vmatprep.mubr.f32.mxu0 0.0
      %2423 = vmatmul.mubr.f32.gmra.mrb[0].mxu0 %v2236
      %v2424 = vpop.f32.mrb[0].mxu0
      %v2425 = vadd.f32 %v2196, %v2424
      %v2426 = vpop.f32.mrb[0].mxu0
      %2427 = vmatprep.mubr.f32.mxu0 0.0
      %2428 = vmatmul.mubr.f32.gmra.mrb[0].mxu0 %v2239
      %v2429 = vpop.f32.mrb[0].mxu0
      %v2430 = vadd.f32 %v2196, %v2429
      %v2431 = vpop.f32.mrb[0].mxu0
      %2432 = vmatprep.mubr.f32.mxu0 0.0
      %2433 = vmatmul.mubr.f32.gmra.mrb[0].mxu0 %v2242
      %v2434 = vpop.f32.mrb[0].mxu0
      %v2435 = vadd.f32 %v2196, %v2434
      %v2436 = vpop.f32.mrb[0].mxu0
      %2437 = vmatprep.mubr.f32.mxu0 0.0
      %2438 = vmatmul.mubr.f32.gmra.mrb[0].mxu0 %v2245
      %v2439 = vpop.f32.mrb[0].mxu0
      %v2440 = vadd.f32 %v2196, %v2439
      %v2441 = vpop.f32.mrb[0].mxu0
      %2442 = vmatprep.mubr.f32.mxu0 0.0
      %2443 = vmatmul.mubr.f32.gmra.mrb[0].mxu0 %v2248
      %v2444 = vpop.f32.mrb[0].mxu0
      %v2445 = vadd.f32 %v2196, %v2444
      %v2446 = vpop.f32.mrb[0].mxu0
      %2447 = vmatprep.mubr.f32.mxu0 0.0
      %2448 = vmatmul.mubr.f32.gmra.mrb[0].mxu0 %v2251
      %v2449 = vpop.f32.mrb[0].mxu0
      %v2450 = vadd.f32 %v2196, %v2449
      %v2451 = vpop.f32.mrb[0].mxu0
      %2452 = vmatprep.mubr.f32.mxu0 0.0
      %2453 = vmatmul.mubr.f32.gmra.mrb[0].mxu0 %v2254
      %v2454 = vpop.f32.mrb[0].mxu0
      %v2455 = vadd.f32 %v2196, %v2454
      %v2456 = vpop.f32.mrb[0].mxu0
      %2457 = vmatprep.mubr.f32.mxu0 0.0
      %2458 = vmatmul.mubr.f32.gmra.mrb[0].mxu0 %v2257
      %v2459 = vpop.f32.mrb[0].mxu0
      %v2460 = vadd.f32 %v2196, %v2459
      %v2461 = vpop.f32.mrb[0].mxu0
      %2462 = vmatprep.mubr.f32.mxu0 0.0
      %2463 = vmatmul.mubr.f32.gmra.mrb[0].mxu0 %v2260
      %v2464 = vpop.f32.mrb[0].mxu0
      %v2465 = vadd.f32 %v2196, %v2464
      %v2466 = vpop.f32.mrb[0].mxu0
      %2467 = vmatprep.mubr.f32.mxu0 0.0
      %2468 = vmatmul.mubr.f32.gmra.mrb[0].mxu0 %v2263
      %v2469 = vpop.f32.mrb[0].mxu0
      %v2470 = vadd.f32 %v2196, %v2469
      %v2471 = vpop.f32.mrb[0].mxu0
      %2472 = vmatprep.mubr.f32.mxu0 0.0
      %2473 = vmatmul.mubr.f32.gmra.mrb[0].mxu0 %v2266
      %v2474 = vpop.f32.mrb[0].mxu0
      %v2475 = vadd.f32 %v2196, %v2474
      %v2476 = vpop.f32.mrb[0].mxu0
      %2477 = vmatprep.mubr.f32.mxu0 0.0
      %2478 = vmatmul.mubr.f32.gmra.mrb[0].mxu0 %v2269
      %v2479 = vpop.f32.mrb[0].mxu0
      %v2480 = vadd.f32 %v2196, %v2479
      %v2481 = vpop.f32.mrb[0].mxu0
      %2482 = vmatprep.mubr.f32.mxu0 0.0
      %2483 = vmatmul.mubr.f32.gmra.mrb[0].mxu0 %v2272
      %v2484 = vpop.f32.mrb[0].mxu0
      %v2485 = vadd.f32 %v2196, %v2484
      %v2486 = vpop.f32.mrb[0].mxu0
      %2487 = vmatprep.mubr.f32.mxu0 0.0
      %2488 = vmatmul.mubr.f32.gmra.mrb[0].mxu0 %v2275
      %v2489 = vpop.f32.mrb[0].mxu0
      %v2490 = vadd.f32 %v2196, %v2489
      %v2491 = vpop.f32.mrb[0].mxu0
      %2492 = vmatprep.mubr.f32.mxu0 0.0
      %2493 = vmatmul.mubr.f32.gmra.mrb[0].mxu0 %v2278
      %v2494 = vpop.f32.mrb[0].mxu0
      %v2495 = vadd.f32 %v2196, %v2494
      %v2496 = vpop.f32.mrb[0].mxu0
      %2497 = vmatprep.mubr.f32.mxu0 0.0
      %2498 = vmatmul.mubr.f32.gmra.mrb[0].mxu0 %v2281
      %v2499 = vpop.f32.mrb[0].mxu0
      %v2500 = vadd.f32 %v2196, %v2499
      %v2501 = vpop.f32.mrb[0].mxu0
      %2502 = vmatprep.mubr.f32.mxu0 0.0
      %2503 = vmatmul.mubr.f32.gmra.mrb[0].mxu0 %v2284
      %v2504 = vpop.f32.mrb[0].mxu0
      %v2505 = vadd.f32 %v2196, %v2504
      %v2506 = vpop.f32.mrb[0].mxu0
      %2507 = vmatprep.mubr.f32.mxu0 0.0
      %2508 = vmatmul.mubr.f32.gmra.mrb[0].mxu0 %v2287
      %v2509 = vpop.f32.mrb[0].mxu0
      %v2510 = vadd.f32 %v2196, %v2509
      %v2511 = vpop.f32.mrb[0].mxu0
      %2512 = vmatprep.mubr.f32.mxu0 0.0
      %2513 = vmatmul.mubr.f32.gmra.mrb[0].mxu0 %v2290
      %v2514 = vpop.f32.mrb[0].mxu0
      %v2515 = vadd.f32 %v2196, %v2514
      %v2516 = vpop.f32.mrb[0].mxu0
      %2517 = vmatprep.mubr.f32.mxu0 0.0
      %2518 = vmatmul.mubr.f32.gmra.mrb[0].mxu0 %v2293
      %v2519 = vpop.f32.mrb[0].mxu0
      %v2520 = vadd.f32 %v2196, %v2519
      %v2521 = vpop.f32.mrb[0].mxu0
      %2522 = vdwg.mxu0
      %v2523 = vmax.f32 %v2365, 0.0
      %v2524 = vmax.f32 %v2370, 0.0
      %v2525 = vmax.f32 %v2375, 0.0
      %v2526 = vmax.f32 %v2380, 0.0
      %v2527 = vmax.f32 %v2385, 0.0
      %v2528 = vmax.f32 %v2390, 0.0
      %v2529 = vmax.f32 %v2395, 0.0
      %v2530 = vmax.f32 %v2400, 0.0
      %v2531 = vmax.f32 %v2405, 0.0
      %v2532 = vmax.f32 %v2410, 0.0
      %v2533 = vmax.f32 %v2415, 0.0
      %v2534 = vmax.f32 %v2420, 0.0
      %v2535 = vmax.f32 %v2425, 0.0
      %v2536 = vmax.f32 %v2430, 0.0
      %v2537 = vmax.f32 %v2435, 0.0
      %v2538 = vmax.f32 %v2440, 0.0
      %v2539 = vmax.f32 %v2445, 0.0
      %v2540 = vmax.f32 %v2450, 0.0
      %v2541 = vmax.f32 %v2455, 0.0
      %v2542 = vmax.f32 %v2460, 0.0
      %v2543 = vmax.f32 %v2465, 0.0
      %v2544 = vmax.f32 %v2470, 0.0
      %v2545 = vmax.f32 %v2475, 0.0
      %v2546 = vmax.f32 %v2480, 0.0
      %v2547 = vmax.f32 %v2485, 0.0
      %v2548 = vmax.f32 %v2490, 0.0
      %v2549 = vmax.f32 %v2495, 0.0
      %v2550 = vmax.f32 %v2500, 0.0
      %v2551 = vmax.f32 %v2505, 0.0
      %v2552 = vmax.f32 %v2510, 0.0
      %v2553 = vmax.f32 %v2515, 0.0
      %v2554 = vmax.f32 %v2520, 0.0
      %2555 = vst.msk [vmem:[%s224] sm:$0xff] %vm287, %v2523
      %2556 = vst.msk [vmem:[%s224 + $0x8] sm:$0xff] %vm287, %v2524
      %2557 = vst.msk [vmem:[%s224 + $0x10] sm:$0xff] %vm287, %v2525
      %2558 = vst.msk [vmem:[%s224 + $0x18] sm:$0xff] %vm287, %v2526
      %2559 = vst.msk [vmem:[%s224 + $0x20] sm:$0xff] %vm287, %v2527
      %2560 = vst.msk [vmem:[%s224 + $0x28] sm:$0xff] %vm287, %v2528
      %2561 = vst.msk [vmem:[%s224 + $0x30] sm:$0xff] %vm287, %v2529
      %2562 = vst.msk [vmem:[%s224 + $0x38] sm:$0xff] %vm287, %v2530
      %2563 = vst.msk [vmem:[%s224 + $0x40] sm:$0xff] %vm287, %v2531
      %2564 = vst.msk [vmem:[%s224 + $0x48] sm:$0xff] %vm287, %v2532
      %2565 = vst.msk [vmem:[%s224 + $0x50] sm:$0xff] %vm287, %v2533
      %2566 = vst.msk [vmem:[%s224 + $0x58] sm:$0xff] %vm287, %v2534
      %2567 = vst.msk [vmem:[%s224 + $0x60] sm:$0xff] %vm287, %v2535
      %2568 = vst.msk [vmem:[%s224 + $0x68] sm:$0xff] %vm287, %v2536
      %2569 = vst.msk [vmem:[%s224 + $0x70] sm:$0xff] %vm287, %v2537
      %2570 = vst.msk [vmem:[%s224 + $0x78] sm:$0xff] %vm287, %v2538
      %2571 = vst.msk [vmem:[%s224 + $0x80] sm:$0xff] %vm287, %v2539
      %2572 = vst.msk [vmem:[%s224 + $0x88] sm:$0xff] %vm287, %v2540
      %2573 = vst.msk [vmem:[%s224 + $0x90] sm:$0xff] %vm287, %v2541
      %2574 = vst.msk [vmem:[%s224 + $0x98] sm:$0xff] %vm287, %v2542
      %2575 = vst.msk [vmem:[%s224 + $0xa0] sm:$0xff] %vm287, %v2543
      %2576 = vst.msk [vmem:[%s224 + $0xa8] sm:$0xff] %vm287, %v2544
      %2577 = vst.msk [vmem:[%s224 + $0xb0] sm:$0xff] %vm287, %v2545
      %2578 = vst.msk [vmem:[%s224 + $0xb8] sm:$0xff] %vm287, %v2546
      %2579 = vst.msk [vmem:[%s224 + $0xc0] sm:$0xff] %vm287, %v2547
      %2580 = vst.msk [vmem:[%s224 + $0xc8] sm:$0xff] %vm287, %v2548
      %2581 = vst.msk [vmem:[%s224 + $0xd0] sm:$0xff] %vm287, %v2549
      %2582 = vst.msk [vmem:[%s224 + $0xd8] sm:$0xff] %vm287, %v2550
      %2583 = vst.msk [vmem:[%s224 + $0xe0] sm:$0xff] %vm287, %v2551
      %2584 = vst.msk [vmem:[%s224 + $0xe8] sm:$0xff] %vm287, %v2552
      %2585 = vst.msk [vmem:[%s224 + $0xf0] sm:$0xff] %vm287, %v2553
      %2586 = vst.msk [vmem:[%s224 + $0xf8] sm:$0xff] %vm287, %v2554
      %p2587 = scmp.lt.s32.totalorder %s16, 1
      %s2588 = scalar_select %p2587, %s16, 1
      %s2589 = smul.addr %s2588, 32
      %s2590 = smul.addr %s2589, 8
      %s2591 = scalar_lea.vmem %s5, %s2590
      // Predicated region
      $region41: #{tpu_custom_call.1} parent=39 // pred_check
        %p2592 = pneg %p144
      $region42: #{tpu_custom_call.1} parent=39 // pred_check_branch
        %2594 = sbr.rel (%p2592) target = $region44
      $region43: #{tpu_custom_call.1} parent=39 // pred_region
        _
      $region44: #{tpu_custom_call.1} parent=39 // pred_fallthru
        _
    $region40: #{tpu_custom_call.1} parent=5 // pred_fallthru
      _
    %p2595 = scmp.le.s32.totalorder 2, %s11
    // Predicated region
    $region45: #{tpu_custom_call.1} parent=5 // pred_check
      %p2596 = pneg %p2595
    $region46: #{tpu_custom_call.1} parent=5 // pred_check_branch
      %2598 = sbr.rel (%p2596) target = $region48
    $region47: #{tpu_custom_call.1} parent=5 // pred_region
      %s2599 = ssub.s32 %s11, 2
      // Predicated region
      $region49: #{tpu_custom_call.1} parent=47 // pred_check
        %p2600 = pneg %p150
      $region50: #{tpu_custom_call.1} parent=47 // pred_check_branch
        %2602 = sbr.rel (%p2600) target = $region52
      $region51: #{tpu_custom_call.1} parent=47 // pred_region
        %p2603 = scmp.lt.s32.totalorder %s17, 1
        %s2604 = scalar_select %p2603, %s17, 1
        %s2605 = smul.addr %s2604, 32
        %s2606 = smul.addr %s2605, 8
        %s2607 = scalar_lea.vmem %s5, %s2606
      $region52: #{tpu_custom_call.1} parent=47 // pred_fallthru
        _
    $region48: #{tpu_custom_call.1} parent=5 // pred_fallthru
      _
  $region6: #{tpu_custom_call.1} parent=0 // loop_footer
    %s15 = sadd.s32 1, %s11
  $region7: #{tpu_custom_call.1} parent=0 // loop_footer_branch
    %10 = sbr.rel target = $region3
  $region8: #{tpu_custom_call.1} parent=0 // loop_exit
    _

</llo_original>
